<compile_context>
chip_gen: v7x
topology: tpu7x:2x2x1
jax: 0.10.0
libtpu: 0.0.40
codegen_flags: <defaults>
</compile_context>

<pallas_src>
import functools

import jax
import jax.numpy as jnp
import numpy as np
from jax.experimental import pallas as pl
from jax.experimental.pallas import tpu as pltpu

_MIN_I32 = -(1 << 31)  # 0x80000000 as a signed int32 bit pattern


def _i32(v):
    """Python int -> equivalent signed int32 bit pattern (two's complement)."""
    v &= 0xFFFFFFFF
    return v - (1 << 32) if v >= (1 << 31) else v


def _kth_largest(x, k, two_bit):
    """k-th largest value along the last axis of f32 `x` (static k >= 1).

    Returns shape x.shape[:-1] + (1,) (keepdims layout).  Bitwise radix select
    over an order-preserving int32 key.  `two_bit=True` selects the 16-pass
    variant that packs the three cumulative bucket counts into bit-fields of a
    single int32 (one lane reduction per pass).  Positive NaNs sort above +inf
    like torch.topk.
    # TODO(synk): negative-payload NaNs sort below -inf here, unlike torch.topk.
    """
    n = x.shape[-1]
    u = pltpu.bitcast(x, jnp.int32)                 # raw float bits
    neg = u >> 31                                   # -1 where sign bit set
    key = u ^ (neg | jnp.int32(_MIN_I32))           # order-preserving key

    rows = x.shape[:-1] + (1,)                      # keepdims row-state layout
    prefix = jnp.zeros(rows, jnp.int32)
    k_rem = jnp.full(rows, k, jnp.int32)

    if two_bit:
        fw = max(1, n.bit_length())                 # field width: counts <= n
        assert 3 * fw <= 31
        fmask = jnp.int32((1 << fw) - 1)
        for b in range(30, -1, -2):                 # 16 passes, bits (b+1, b)
            hm = jnp.int32(_i32((0xFFFFFFFF << (b + 2)) & 0xFFFFFFFF))
            match = (key & hm) == prefix            # rows matching the prefix
            dig = (key >> b) & 3                    # 2-bit digit in [0, 3]
            packed_ind = ((dig >= 1).astype(jnp.int32)
                          + ((dig >= 2).astype(jnp.int32) << fw)
                          + ((dig >= 3).astype(jnp.int32) << (2 * fw)))
            contrib = jnp.where(match, packed_ind, 0)
            packed = jnp.sum(contrib, axis=-1, keepdims=True)  # one lane reduce
            cum1 = packed & fmask                   # count(digit >= 1)
            cum2 = (packed >> fw) & fmask           # count(digit >= 2)
            cum3 = (packed >> (2 * fw)) & fmask     # count(digit == 3)
            ge1 = cum1 >= k_rem
            ge2 = cum2 >= k_rem
            ge3 = cum3 >= k_rem
            digit = (ge1.astype(jnp.int32) + ge2.astype(jnp.int32)
                     + ge3.astype(jnp.int32))       # chosen digit in [0, 3]
            sub = jnp.where(ge3, 0,
                            jnp.where(ge2, cum3,
                                      jnp.where(ge1, cum2, cum1)))
            k_rem = k_rem - sub
            prefix = prefix | (digit << b)
    else:
        for b in range(31, -1, -1):                 # 32 passes, 1 bit each
            bit = jnp.int32(_i32(1 << b))
            hm = jnp.int32(_i32((0xFFFFFFFF << b) & 0xFFFFFFFF))
            cand = prefix | bit
            match = (key & hm) == cand
            cnt = jnp.sum(match.astype(jnp.int32), axis=-1, keepdims=True)
            take = cnt >= k_rem
            prefix = jnp.where(take, cand, prefix)
            k_rem = jnp.where(take, k_rem, k_rem - cnt)

    # Un-flip the selected key back to its float bit pattern.
    unflip = jnp.where(prefix < 0, jnp.int32(_MIN_I32), jnp.int32(-1))
    return pltpu.bitcast(prefix ^ unflip, jnp.float32)      # (..., 1) f32


def gmedp_kernel(x_ref, wt_ref, b_ref, o_ref, acc_ref, *, k, two_bit):
    """One (tb, tc) tile: pool over N, accumulate projection (+bias) into acc."""
    j = pl.program_id(1)

    @pl.when(j == 0)
    def _init():
        # Bias folded into the accumulator init (drops the epilogue add).
        acc_ref[...] = jnp.broadcast_to(b_ref[...], acc_ref.shape)

    pooled = _kth_largest(x_ref[...], k, two_bit)            # (tb, tc, 1) f32
    tc = pooled.shape[1]
    if tc <= 16:
        # Tiny contraction: tc exact-f32 VPU broadcast-FMAs beat a mostly-empty
        # (bf16-emulated) MXU pass.
        w = wt_ref[...]                                      # (tc, NC_pad)
        upd = acc_ref[...]                                   # (tb, 1, NC_pad)
        for c in range(tc):
            upd = upd + pooled[:, c:c + 1, :] * w[c:c + 1, :]
        acc_ref[...] = upd
    else:
        proj = jnp.dot(pooled[:, :, 0], wt_ref[...],
                       preferred_element_type=jnp.float32)   # (tb, NC_pad)
        acc_ref[...] += proj[:, None, :]

    @pl.when(j == pl.num_programs(1) - 1)
    def _finalize():
        o_ref[...] = acc_ref[...].astype(o_ref.dtype)


def _pick_tile(n, cap, align=1):
    """Largest divisor of n that is <= cap, preferring multiples of `align`."""
    cap = int(max(1, min(n, cap)))
    for d in range(cap, 0, -1):
        if n % d == 0 and d % align == 0:
            return d
    for d in range(cap, 0, -1):
        if n % d == 0:
            return d
    return 1


def _vmem_capacity_bytes():
    """Physical VMEM per core; falls back to the most restrictive gen (v7x)."""
    try:
        info = pltpu.get_tpu_info()
        cap = getattr(info, "vmem_capacity_bytes", None)
        if cap:
            return int(cap)
    except Exception:
        pass
    return 64 * 1024 * 1024


def gmedp_block(x, weight, bias):
    """x: (B, C, H, W) f32, weight: (NC, C), bias: (NC,) -> (B, NC) f32."""
    B, C, H, W = x.shape
    N = H * W
    assert N >= 2, "GMedPBlock needs H*W >= 2 so that k = N//2 >= 1"
    k = N // 2                                     # == int(N / 2) in PyTorch
    NC = weight.shape[0]

    # Padding: C -> multiple of 8 (sublane rule), N -> multiple of 128 with
    # -inf (never enters the top-k since k <= N), NC -> multiple of 128 so the
    # accumulator and output stores are lane-dense.
    C_pad = ((C + 7) // 8) * 8
    N_pad = ((N + 127) // 128) * 128
    NC_pad = ((NC + 127) // 128) * 128

    x_flat = x.reshape(B, C, N).astype(jnp.float32)
    if C_pad != C or N_pad != N:
        xp = jnp.full((B, C_pad, N_pad), -jnp.inf, dtype=jnp.float32)
        xp = xp.at[:, :C, :N].set(x_flat)
        if C_pad != C:
            xp = xp.at[:, C:, :].set(0.0)          # pad channels: pooled == 0
        x_flat = xp
    w_t = jnp.zeros((C_pad, NC_pad), jnp.float32).at[:C, :NC].set(weight.T)
    b2d = jnp.zeros((1, NC_pad), jnp.float32).at[:, :NC].set(bias)

    # Generation-aware VMEM budgeting: ~48 MiB scoped limit on v7x (64 MiB
    # physical), ~96 MiB on v5e/v6e (128 MiB physical).  One x block is kept
    # at <= limit/16 so double-buffered blocks + the int32 radix-select
    # temporaries (a few block sizes of compiler scratch) fit with headroom.
    vmem_limit = int(min(96 * 1024 * 1024,
                         max(32 * 1024 * 1024, (_vmem_capacity_bytes() * 3) // 4)))
    budget_elems = max(256 * 1024, vmem_limit // 16) // 4   # f32 elems / x block

    tc = _pick_tile(C_pad, max(8, budget_elems // N_pad), align=8)
    tb_cap = max(1, budget_elems // (N_pad * tc))
    # Keep the (tb, 1, NC_pad) accumulator / output blocks small too (they are
    # sublane-padded 8x in VMEM).
    tb_cap = min(tb_cap, max(1, budget_elems // (8 * NC_pad)))
    if B >= 2:
        tb_cap = min(tb_cap, max(1, B // 2))       # >= 2 parallel steps (v7x 2 TCs)
    tb = _pick_tile(B, tb_cap, align=8)
    grid = (B // tb, C_pad // tc)

    two_bit = 3 * N_pad.bit_length() <= 31         # packed counts fit one int32
    passes = 16 if two_bit else 32
    cost = pl.CostEstimate(
        flops=passes * 8 * B * C_pad * N_pad + 2 * B * C_pad * NC_pad,
        transcendentals=0,
        bytes_accessed=4 * (B * C_pad * N_pad + C_pad * NC_pad
                            + NC_pad + B * NC_pad),
    )

    out = pl.pallas_call(
        functools.partial(gmedp_kernel, k=k, two_bit=two_bit),
        out_shape=jax.ShapeDtypeStruct((B, 1, NC_pad), jnp.float32),
        grid=grid,
        in_specs=[
            pl.BlockSpec((tb, tc, N_pad), lambda i, j: (i, j, 0)),
            pl.BlockSpec((tc, NC_pad), lambda i, j: (j, 0)),
            pl.BlockSpec((1, NC_pad), lambda i, j: (0, 0)),
        ],
        out_specs=pl.BlockSpec((tb, 1, NC_pad), lambda i, j: (i, 0, 0)),
        scratch_shapes=[pltpu.VMEM((tb, 1, NC_pad), jnp.float32)],
        compiler_params=pltpu.CompilerParams(
            dimension_semantics=("parallel", "arbitrary"),
            vmem_limit_bytes=vmem_limit),
        cost_estimate=cost,
    )(x_flat, w_t, b2d)
    return out.reshape(B, NC_pad)[:, :NC]


def ref_forward(x, weight, bias):
    """Pure-JAX reference matching the PyTorch forward."""
    B, C, H, W = x.shape
    N = H * W
    k = N // 2
    xf = x.reshape(B, C, N)
    s = jnp.sort(xf, axis=-1)                      # ascending
    pooled = s[:, :, N - k]                        # k-th largest
    return pooled @ weight.T + bias


if __name__ == "__main__":
    key = jax.random.PRNGKey(0)
    k1, k2, k3 = jax.random.split(key, 3)

    B, C, H, W = 2, 4, 16, 16                      # in_features = C = 4
    num_classes = 8

    x = jax.random.normal(k1, (B, C, H, W), dtype=jnp.float32)

    # Deterministic nn.Linear-style init (uniform in [-1/sqrt(C), 1/sqrt(C)]).
    bound = 1.0 / np.sqrt(C)
    weight = jax.random.uniform(k2, (num_classes, C), minval=-bound,
                                maxval=bound, dtype=jnp.float32)
    bias = jax.random.uniform(k3, (num_classes,), minval=-bound, maxval=bound,
                              dtype=jnp.float32)

    out = jax.block_until_ready(gmedp_block(x, weight, bias))

    ref = ref_forward(x, weight, bias)
    np.testing.assert_allclose(np.asarray(out), np.asarray(ref),
                               rtol=1e-5, atol=1e-5)

    print("KERNEL_OK")
</pallas_src>

<mosaic_0001>
module attributes {stable_mosaic.version = 11 : i64} {
  func.func @gmedp_kernel(%arg0: i32, %arg1: i32, %arg2: memref<1x8x256xf32, #tpu.memory_space<vmem>>, %arg3: memref<8x128xf32, #tpu.memory_space<vmem>>, %arg4: memref<1x128xf32, #tpu.memory_space<vmem>>, %arg5: memref<1x1x128xf32, #tpu.memory_space<vmem>>, %arg6: memref<1x1x128xf32, #tpu.memory_space<vmem>>) attributes {dimension_semantics = [#tpu.dimension_semantics<parallel>, #tpu.dimension_semantics<arbitrary>], iteration_bounds = array<i64: 2, 1>, scalar_prefetch = 0 : i64, scratch_operands = 1 : i64, tpu.core_type = #tpu.core_type<tc>, window_params = [{transform_indices = @transform_0, window_bounds = array<i64: 1, 8, 256>}, {transform_indices = @transform_1, window_bounds = array<i64: 8, 128>}, {pipeline_mode = #tpu.pipeline_mode<synchronous>, transform_indices = @transform_2, window_bounds = array<i64: 1, 128>}, {transform_indices = @transform_3, window_bounds = array<i64: 1, 1, 128>}]} {
    %c0_i32 = arith.constant 0 : i32
    %0 = arith.cmpi eq, %arg1, %c0_i32 : i32
    %1 = arith.extui %0 : i1 to i32
    %c0_i32_0 = arith.constant 0 : i32
    %2 = arith.cmpi ne, %1, %c0_i32_0 : i32
    scf.if %2 {
      %c0_252 = arith.constant 0 : index
      %c0_253 = arith.constant 0 : index
      %916 = vector.load %arg4[%c0_252, %c0_253] : memref<1x128xf32, #tpu.memory_space<vmem>>, vector<1x128xf32>
      %917 = vector.shape_cast %916 : vector<1x128xf32> to vector<1x1x128xf32>
      %c0_254 = arith.constant 0 : index
      %c0_255 = arith.constant 0 : index
      %c0_256 = arith.constant 0 : index
      %918 = vector.load %arg6[%c0_254, %c0_255, %c0_256] : memref<1x1x128xf32, #tpu.memory_space<vmem>>, vector<1x1x128xf32>
      tpu.vector_store %arg6[%c0_254, %c0_255, %c0_256], %917 {strides = array<i32>} : memref<1x1x128xf32, #tpu.memory_space<vmem>>, vector<1x1x128xf32>,
    } else {
    }
    %c0 = arith.constant 0 : index
    %c0_1 = arith.constant 0 : index
    %c0_2 = arith.constant 0 : index
    %3 = vector.load %arg2[%c0, %c0_1, %c0_2] : memref<1x8x256xf32, #tpu.memory_space<vmem>>, vector<1x8x256xf32>
    %4 = tpu.bitcast %3 : vector<1x8x256xf32> -> vector<1x8x256xi32>
    %c31_i32 = arith.constant 31 : i32
    %5 = vector.broadcast %c31_i32 : i32 to vector<1x8x256xi32>
    %6 = arith.shrsi %4, %5 : vector<1x8x256xi32>
    %c-2147483648_i32 = arith.constant -2147483648 : i32
    %7 = vector.broadcast %c-2147483648_i32 : i32 to vector<1x8x256xi32>
    %8 = arith.ori %6, %7 : vector<1x8x256xi32>
    %9 = arith.xori %4, %8 : vector<1x8x256xi32>
    %c0_i32_3 = arith.constant 0 : i32
    %10 = vector.broadcast %c0_i32_3 : i32 to vector<1x8x1xi32>
    %c128_i32 = arith.constant 128 : i32
    %11 = vector.broadcast %c128_i32 : i32 to vector<1x8x1xi32>
    %c0_i32_4 = arith.constant 0 : i32
    %12 = vector.broadcast %c0_i32_4 : i32 to vector<1x8x256xi32>
    %13 = arith.andi %9, %12 : vector<1x8x256xi32>
    %14 = vector.broadcast %10 : vector<1x8x1xi32> to vector<1x8x256xi32>
    %15 = arith.cmpi eq, %13, %14 : vector<1x8x256xi32>
    %c30_i32 = arith.constant 30 : i32
    %16 = vector.broadcast %c30_i32 : i32 to vector<1x8x256xi32>
    %17 = arith.shrsi %9, %16 : vector<1x8x256xi32>
    %c3_i32 = arith.constant 3 : i32
    %18 = vector.broadcast %c3_i32 : i32 to vector<1x8x256xi32>
    %19 = arith.andi %17, %18 : vector<1x8x256xi32>
    %c1_i32 = arith.constant 1 : i32
    %20 = vector.broadcast %c1_i32 : i32 to vector<1x8x256xi32>
    %21 = arith.cmpi sge, %19, %20 : vector<1x8x256xi32>
    %22 = arith.extui %21 : vector<1x8x256xi1> to vector<1x8x256xi32>
    %c2_i32 = arith.constant 2 : i32
    %23 = vector.broadcast %c2_i32 : i32 to vector<1x8x256xi32>
    %24 = arith.cmpi sge, %19, %23 : vector<1x8x256xi32>
    %25 = arith.extui %24 : vector<1x8x256xi1> to vector<1x8x256xi32>
    %c9_i32 = arith.constant 9 : i32
    %26 = vector.broadcast %c9_i32 : i32 to vector<1x8x256xi32>
    %27 = arith.shli %25, %26 : vector<1x8x256xi32>
    %28 = arith.addi %22, %27 : vector<1x8x256xi32>
    %c3_i32_5 = arith.constant 3 : i32
    %29 = vector.broadcast %c3_i32_5 : i32 to vector<1x8x256xi32>
    %30 = arith.cmpi sge, %19, %29 : vector<1x8x256xi32>
    %31 = arith.extui %30 : vector<1x8x256xi1> to vector<1x8x256xi32>
    %c18_i32 = arith.constant 18 : i32
    %32 = vector.broadcast %c18_i32 : i32 to vector<1x8x256xi32>
    %33 = arith.shli %31, %32 : vector<1x8x256xi32>
    %34 = arith.addi %28, %33 : vector<1x8x256xi32>
    %c0_i32_6 = arith.constant 0 : i32
    %35 = vector.broadcast %c0_i32_6 : i32 to vector<1x8x256xi32>
    %36 = arith.select %15, %34, %35 : vector<1x8x256xi1>, vector<1x8x256xi32>
    %cst = arith.constant dense<0> : vector<1x8xi32>
    %37 = vector.multi_reduction <add>, %36, %cst [2] : vector<1x8x256xi32> to vector<1x8xi32>
    %38 = vector.shape_cast %37 : vector<1x8xi32> to vector<1x8x1xi32>
    %c511_i32 = arith.constant 511 : i32
    %39 = vector.broadcast %c511_i32 : i32 to vector<1x8x1xi32>
    %40 = arith.andi %38, %39 : vector<1x8x1xi32>
    %c9_i32_7 = arith.constant 9 : i32
    %41 = vector.broadcast %c9_i32_7 : i32 to vector<1x8x1xi32>
    %42 = arith.shrsi %38, %41 : vector<1x8x1xi32>
    %c511_i32_8 = arith.constant 511 : i32
    %43 = vector.broadcast %c511_i32_8 : i32 to vector<1x8x1xi32>
    %44 = arith.andi %42, %43 : vector<1x8x1xi32>
    %c18_i32_9 = arith.constant 18 : i32
    %45 = vector.broadcast %c18_i32_9 : i32 to vector<1x8x1xi32>
    %46 = arith.shrsi %38, %45 : vector<1x8x1xi32>
    %c511_i32_10 = arith.constant 511 : i32
    %47 = vector.broadcast %c511_i32_10 : i32 to vector<1x8x1xi32>
    %48 = arith.andi %46, %47 : vector<1x8x1xi32>
    %49 = arith.cmpi sge, %40, %11 : vector<1x8x1xi32>
    %50 = arith.cmpi sge, %44, %11 : vector<1x8x1xi32>
    %51 = arith.cmpi sge, %48, %11 : vector<1x8x1xi32>
    %52 = arith.extui %49 : vector<1x8x1xi1> to vector<1x8x1xi32>
    %53 = arith.extui %50 : vector<1x8x1xi1> to vector<1x8x1xi32>
    %54 = arith.addi %52, %53 : vector<1x8x1xi32>
    %55 = arith.extui %51 : vector<1x8x1xi1> to vector<1x8x1xi32>
    %56 = arith.addi %54, %55 : vector<1x8x1xi32>
    %57 = arith.select %49, %44, %40 : vector<1x8x1xi1>, vector<1x8x1xi32>
    %58 = arith.select %50, %48, %57 : vector<1x8x1xi1>, vector<1x8x1xi32>
    %c0_i32_11 = arith.constant 0 : i32
    %59 = vector.broadcast %c0_i32_11 : i32 to vector<1x8x1xi32>
    %60 = arith.select %51, %59, %58 : vector<1x8x1xi1>, vector<1x8x1xi32>
    %61 = arith.subi %11, %60 : vector<1x8x1xi32>
    %c30_i32_12 = arith.constant 30 : i32
    %62 = vector.broadcast %c30_i32_12 : i32 to vector<1x8x1xi32>
    %63 = arith.shli %56, %62 : vector<1x8x1xi32>
    %64 = arith.ori %10, %63 : vector<1x8x1xi32>
    %c-1073741824_i32 = arith.constant -1073741824 : i32
    %65 = vector.broadcast %c-1073741824_i32 : i32 to vector<1x8x256xi32>
    %66 = arith.andi %9, %65 : vector<1x8x256xi32>
    %67 = vector.broadcast %64 : vector<1x8x1xi32> to vector<1x8x256xi32>
    %68 = arith.cmpi eq, %66, %67 : vector<1x8x256xi32>
    %c28_i32 = arith.constant 28 : i32
    %69 = vector.broadcast %c28_i32 : i32 to vector<1x8x256xi32>
    %70 = arith.shrsi %9, %69 : vector<1x8x256xi32>
    %c3_i32_13 = arith.constant 3 : i32
    %71 = vector.broadcast %c3_i32_13 : i32 to vector<1x8x256xi32>
    %72 = arith.andi %70, %71 : vector<1x8x256xi32>
    %c1_i32_14 = arith.constant 1 : i32
    %73 = vector.broadcast %c1_i32_14 : i32 to vector<1x8x256xi32>
    %74 = arith.cmpi sge, %72, %73 : vector<1x8x256xi32>
    %75 = arith.extui %74 : vector<1x8x256xi1> to vector<1x8x256xi32>
    %c2_i32_15 = arith.constant 2 : i32
    %76 = vector.broadcast %c2_i32_15 : i32 to vector<1x8x256xi32>
    %77 = arith.cmpi sge, %72, %76 : vector<1x8x256xi32>
    %78 = arith.extui %77 : vector<1x8x256xi1> to vector<1x8x256xi32>
    %c9_i32_16 = arith.constant 9 : i32
    %79 = vector.broadcast %c9_i32_16 : i32 to vector<1x8x256xi32>
    %80 = arith.shli %78, %79 : vector<1x8x256xi32>
    %81 = arith.addi %75, %80 : vector<1x8x256xi32>
    %c3_i32_17 = arith.constant 3 : i32
    %82 = vector.broadcast %c3_i32_17 : i32 to vector<1x8x256xi32>
    %83 = arith.cmpi sge, %72, %82 : vector<1x8x256xi32>
    %84 = arith.extui %83 : vector<1x8x256xi1> to vector<1x8x256xi32>
    %c18_i32_18 = arith.constant 18 : i32
    %85 = vector.broadcast %c18_i32_18 : i32 to vector<1x8x256xi32>
    %86 = arith.shli %84, %85 : vector<1x8x256xi32>
    %87 = arith.addi %81, %86 : vector<1x8x256xi32>
    %c0_i32_19 = arith.constant 0 : i32
    %88 = vector.broadcast %c0_i32_19 : i32 to vector<1x8x256xi32>
    %89 = arith.select %68, %87, %88 : vector<1x8x256xi1>, vector<1x8x256xi32>
    %cst_20 = arith.constant dense<0> : vector<1x8xi32>
    %90 = vector.multi_reduction <add>, %89, %cst_20 [2] : vector<1x8x256xi32> to vector<1x8xi32>
    %91 = vector.shape_cast %90 : vector<1x8xi32> to vector<1x8x1xi32>
    %c511_i32_21 = arith.constant 511 : i32
    %92 = vector.broadcast %c511_i32_21 : i32 to vector<1x8x1xi32>
    %93 = arith.andi %91, %92 : vector<1x8x1xi32>
    %c9_i32_22 = arith.constant 9 : i32
    %94 = vector.broadcast %c9_i32_22 : i32 to vector<1x8x1xi32>
    %95 = arith.shrsi %91, %94 : vector<1x8x1xi32>
    %c511_i32_23 = arith.constant 511 : i32
    %96 = vector.broadcast %c511_i32_23 : i32 to vector<1x8x1xi32>
    %97 = arith.andi %95, %96 : vector<1x8x1xi32>
    %c18_i32_24 = arith.constant 18 : i32
    %98 = vector.broadcast %c18_i32_24 : i32 to vector<1x8x1xi32>
    %99 = arith.shrsi %91, %98 : vector<1x8x1xi32>
    %c511_i32_25 = arith.constant 511 : i32
    %100 = vector.broadcast %c511_i32_25 : i32 to vector<1x8x1xi32>
    %101 = arith.andi %99, %100 : vector<1x8x1xi32>
    %102 = arith.cmpi sge, %93, %61 : vector<1x8x1xi32>
    %103 = arith.cmpi sge, %97, %61 : vector<1x8x1xi32>
    %104 = arith.cmpi sge, %101, %61 : vector<1x8x1xi32>
    %105 = arith.extui %102 : vector<1x8x1xi1> to vector<1x8x1xi32>
    %106 = arith.extui %103 : vector<1x8x1xi1> to vector<1x8x1xi32>
    %107 = arith.addi %105, %106 : vector<1x8x1xi32>
    %108 = arith.extui %104 : vector<1x8x1xi1> to vector<1x8x1xi32>
    %109 = arith.addi %107, %108 : vector<1x8x1xi32>
    %110 = arith.select %102, %97, %93 : vector<1x8x1xi1>, vector<1x8x1xi32>
    %111 = arith.select %103, %101, %110 : vector<1x8x1xi1>, vector<1x8x1xi32>
    %c0_i32_26 = arith.constant 0 : i32
    %112 = vector.broadcast %c0_i32_26 : i32 to vector<1x8x1xi32>
    %113 = arith.select %104, %112, %111 : vector<1x8x1xi1>, vector<1x8x1xi32>
    %114 = arith.subi %61, %113 : vector<1x8x1xi32>
    %c28_i32_27 = arith.constant 28 : i32
    %115 = vector.broadcast %c28_i32_27 : i32 to vector<1x8x1xi32>
    %116 = arith.shli %109, %115 : vector<1x8x1xi32>
    %117 = arith.ori %64, %116 : vector<1x8x1xi32>
    %c-268435456_i32 = arith.constant -268435456 : i32
    %118 = vector.broadcast %c-268435456_i32 : i32 to vector<1x8x256xi32>
    %119 = arith.andi %9, %118 : vector<1x8x256xi32>
    %120 = vector.broadcast %117 : vector<1x8x1xi32> to vector<1x8x256xi32>
    %121 = arith.cmpi eq, %119, %120 : vector<1x8x256xi32>
    %c26_i32 = arith.constant 26 : i32
    %122 = vector.broadcast %c26_i32 : i32 to vector<1x8x256xi32>
    %123 = arith.shrsi %9, %122 : vector<1x8x256xi32>
    %c3_i32_28 = arith.constant 3 : i32
    %124 = vector.broadcast %c3_i32_28 : i32 to vector<1x8x256xi32>
    %125 = arith.andi %123, %124 : vector<1x8x256xi32>
    %c1_i32_29 = arith.constant 1 : i32
    %126 = vector.broadcast %c1_i32_29 : i32 to vector<1x8x256xi32>
    %127 = arith.cmpi sge, %125, %126 : vector<1x8x256xi32>
    %128 = arith.extui %127 : vector<1x8x256xi1> to vector<1x8x256xi32>
    %c2_i32_30 = arith.constant 2 : i32
    %129 = vector.broadcast %c2_i32_30 : i32 to vector<1x8x256xi32>
    %130 = arith.cmpi sge, %125, %129 : vector<1x8x256xi32>
    %131 = arith.extui %130 : vector<1x8x256xi1> to vector<1x8x256xi32>
    %c9_i32_31 = arith.constant 9 : i32
    %132 = vector.broadcast %c9_i32_31 : i32 to vector<1x8x256xi32>
    %133 = arith.shli %131, %132 : vector<1x8x256xi32>
    %134 = arith.addi %128, %133 : vector<1x8x256xi32>
    %c3_i32_32 = arith.constant 3 : i32
    %135 = vector.broadcast %c3_i32_32 : i32 to vector<1x8x256xi32>
    %136 = arith.cmpi sge, %125, %135 : vector<1x8x256xi32>
    %137 = arith.extui %136 : vector<1x8x256xi1> to vector<1x8x256xi32>
    %c18_i32_33 = arith.constant 18 : i32
    %138 = vector.broadcast %c18_i32_33 : i32 to vector<1x8x256xi32>
    %139 = arith.shli %137, %138 : vector<1x8x256xi32>
    %140 = arith.addi %134, %139 : vector<1x8x256xi32>
    %c0_i32_34 = arith.constant 0 : i32
    %141 = vector.broadcast %c0_i32_34 : i32 to vector<1x8x256xi32>
    %142 = arith.select %121, %140, %141 : vector<1x8x256xi1>, vector<1x8x256xi32>
    %cst_35 = arith.constant dense<0> : vector<1x8xi32>
    %143 = vector.multi_reduction <add>, %142, %cst_35 [2] : vector<1x8x256xi32> to vector<1x8xi32>
    %144 = vector.shape_cast %143 : vector<1x8xi32> to vector<1x8x1xi32>
    %c511_i32_36 = arith.constant 511 : i32
    %145 = vector.broadcast %c511_i32_36 : i32 to vector<1x8x1xi32>
    %146 = arith.andi %144, %145 : vector<1x8x1xi32>
    %c9_i32_37 = arith.constant 9 : i32
    %147 = vector.broadcast %c9_i32_37 : i32 to vector<1x8x1xi32>
    %148 = arith.shrsi %144, %147 : vector<1x8x1xi32>
    %c511_i32_38 = arith.constant 511 : i32
    %149 = vector.broadcast %c511_i32_38 : i32 to vector<1x8x1xi32>
    %150 = arith.andi %148, %149 : vector<1x8x1xi32>
    %c18_i32_39 = arith.constant 18 : i32
    %151 = vector.broadcast %c18_i32_39 : i32 to vector<1x8x1xi32>
    %152 = arith.shrsi %144, %151 : vector<1x8x1xi32>
    %c511_i32_40 = arith.constant 511 : i32
    %153 = vector.broadcast %c511_i32_40 : i32 to vector<1x8x1xi32>
    %154 = arith.andi %152, %153 : vector<1x8x1xi32>
    %155 = arith.cmpi sge, %146, %114 : vector<1x8x1xi32>
    %156 = arith.cmpi sge, %150, %114 : vector<1x8x1xi32>
    %157 = arith.cmpi sge, %154, %114 : vector<1x8x1xi32>
    %158 = arith.extui %155 : vector<1x8x1xi1> to vector<1x8x1xi32>
    %159 = arith.extui %156 : vector<1x8x1xi1> to vector<1x8x1xi32>
    %160 = arith.addi %158, %159 : vector<1x8x1xi32>
    %161 = arith.extui %157 : vector<1x8x1xi1> to vector<1x8x1xi32>
    %162 = arith.addi %160, %161 : vector<1x8x1xi32>
    %163 = arith.select %155, %150, %146 : vector<1x8x1xi1>, vector<1x8x1xi32>
    %164 = arith.select %156, %154, %163 : vector<1x8x1xi1>, vector<1x8x1xi32>
    %c0_i32_41 = arith.constant 0 : i32
    %165 = vector.broadcast %c0_i32_41 : i32 to vector<1x8x1xi32>
    %166 = arith.select %157, %165, %164 : vector<1x8x1xi1>, vector<1x8x1xi32>
    %167 = arith.subi %114, %166 : vector<1x8x1xi32>
    %c26_i32_42 = arith.constant 26 : i32
    %168 = vector.broadcast %c26_i32_42 : i32 to vector<1x8x1xi32>
    %169 = arith.shli %162, %168 : vector<1x8x1xi32>
    %170 = arith.ori %117, %169 : vector<1x8x1xi32>
    %c-67108864_i32 = arith.constant -67108864 : i32
    %171 = vector.broadcast %c-67108864_i32 : i32 to vector<1x8x256xi32>
    %172 = arith.andi %9, %171 : vector<1x8x256xi32>
    %173 = vector.broadcast %170 : vector<1x8x1xi32> to vector<1x8x256xi32>
    %174 = arith.cmpi eq, %172, %173 : vector<1x8x256xi32>
    %c24_i32 = arith.constant 24 : i32
    %175 = vector.broadcast %c24_i32 : i32 to vector<1x8x256xi32>
    %176 = arith.shrsi %9, %175 : vector<1x8x256xi32>
    %c3_i32_43 = arith.constant 3 : i32
    %177 = vector.broadcast %c3_i32_43 : i32 to vector<1x8x256xi32>
    %178 = arith.andi %176, %177 : vector<1x8x256xi32>
    %c1_i32_44 = arith.constant 1 : i32
    %179 = vector.broadcast %c1_i32_44 : i32 to vector<1x8x256xi32>
    %180 = arith.cmpi sge, %178, %179 : vector<1x8x256xi32>
    %181 = arith.extui %180 : vector<1x8x256xi1> to vector<1x8x256xi32>
    %c2_i32_45 = arith.constant 2 : i32
    %182 = vector.broadcast %c2_i32_45 : i32 to vector<1x8x256xi32>
    %183 = arith.cmpi sge, %178, %182 : vector<1x8x256xi32>
    %184 = arith.extui %183 : vector<1x8x256xi1> to vector<1x8x256xi32>
    %c9_i32_46 = arith.constant 9 : i32
    %185 = vector.broadcast %c9_i32_46 : i32 to vector<1x8x256xi32>
    %186 = arith.shli %184, %185 : vector<1x8x256xi32>
    %187 = arith.addi %181, %186 : vector<1x8x256xi32>
    %c3_i32_47 = arith.constant 3 : i32
    %188 = vector.broadcast %c3_i32_47 : i32 to vector<1x8x256xi32>
    %189 = arith.cmpi sge, %178, %188 : vector<1x8x256xi32>
    %190 = arith.extui %189 : vector<1x8x256xi1> to vector<1x8x256xi32>
    %c18_i32_48 = arith.constant 18 : i32
    %191 = vector.broadcast %c18_i32_48 : i32 to vector<1x8x256xi32>
    %192 = arith.shli %190, %191 : vector<1x8x256xi32>
    %193 = arith.addi %187, %192 : vector<1x8x256xi32>
    %c0_i32_49 = arith.constant 0 : i32
    %194 = vector.broadcast %c0_i32_49 : i32 to vector<1x8x256xi32>
    %195 = arith.select %174, %193, %194 : vector<1x8x256xi1>, vector<1x8x256xi32>
    %cst_50 = arith.constant dense<0> : vector<1x8xi32>
    %196 = vector.multi_reduction <add>, %195, %cst_50 [2] : vector<1x8x256xi32> to vector<1x8xi32>
    %197 = vector.shape_cast %196 : vector<1x8xi32> to vector<1x8x1xi32>
    %c511_i32_51 = arith.constant 511 : i32
    %198 = vector.broadcast %c511_i32_51 : i32 to vector<1x8x1xi32>
    %199 = arith.andi %197, %198 : vector<1x8x1xi32>
    %c9_i32_52 = arith.constant 9 : i32
    %200 = vector.broadcast %c9_i32_52 : i32 to vector<1x8x1xi32>
    %201 = arith.shrsi %197, %200 : vector<1x8x1xi32>
    %c511_i32_53 = arith.constant 511 : i32
    %202 = vector.broadcast %c511_i32_53 : i32 to vector<1x8x1xi32>
    %203 = arith.andi %201, %202 : vector<1x8x1xi32>
    %c18_i32_54 = arith.constant 18 : i32
    %204 = vector.broadcast %c18_i32_54 : i32 to vector<1x8x1xi32>
    %205 = arith.shrsi %197, %204 : vector<1x8x1xi32>
    %c511_i32_55 = arith.constant 511 : i32
    %206 = vector.broadcast %c511_i32_55 : i32 to vector<1x8x1xi32>
    %207 = arith.andi %205, %206 : vector<1x8x1xi32>
    %208 = arith.cmpi sge, %199, %167 : vector<1x8x1xi32>
    %209 = arith.cmpi sge, %203, %167 : vector<1x8x1xi32>
    %210 = arith.cmpi sge, %207, %167 : vector<1x8x1xi32>
    %211 = arith.extui %208 : vector<1x8x1xi1> to vector<1x8x1xi32>
    %212 = arith.extui %209 : vector<1x8x1xi1> to vector<1x8x1xi32>
    %213 = arith.addi %211, %212 : vector<1x8x1xi32>
    %214 = arith.extui %210 : vector<1x8x1xi1> to vector<1x8x1xi32>
    %215 = arith.addi %213, %214 : vector<1x8x1xi32>
    %216 = arith.select %208, %203, %199 : vector<1x8x1xi1>, vector<1x8x1xi32>
    %217 = arith.select %209, %207, %216 : vector<1x8x1xi1>, vector<1x8x1xi32>
    %c0_i32_56 = arith.constant 0 : i32
    %218 = vector.broadcast %c0_i32_56 : i32 to vector<1x8x1xi32>
    %219 = arith.select %210, %218, %217 : vector<1x8x1xi1>, vector<1x8x1xi32>
    %220 = arith.subi %167, %219 : vector<1x8x1xi32>
    %c24_i32_57 = arith.constant 24 : i32
    %221 = vector.broadcast %c24_i32_57 : i32 to vector<1x8x1xi32>
    %222 = arith.shli %215, %221 : vector<1x8x1xi32>
    %223 = arith.ori %170, %222 : vector<1x8x1xi32>
    %c-16777216_i32 = arith.constant -16777216 : i32
    %224 = vector.broadcast %c-16777216_i32 : i32 to vector<1x8x256xi32>
    %225 = arith.andi %9, %224 : vector<1x8x256xi32>
    %226 = vector.broadcast %223 : vector<1x8x1xi32> to vector<1x8x256xi32>
    %227 = arith.cmpi eq, %225, %226 : vector<1x8x256xi32>
    %c22_i32 = arith.constant 22 : i32
    %228 = vector.broadcast %c22_i32 : i32 to vector<1x8x256xi32>
    %229 = arith.shrsi %9, %228 : vector<1x8x256xi32>
    %c3_i32_58 = arith.constant 3 : i32
    %230 = vector.broadcast %c3_i32_58 : i32 to vector<1x8x256xi32>
    %231 = arith.andi %229, %230 : vector<1x8x256xi32>
    %c1_i32_59 = arith.constant 1 : i32
    %232 = vector.broadcast %c1_i32_59 : i32 to vector<1x8x256xi32>
    %233 = arith.cmpi sge, %231, %232 : vector<1x8x256xi32>
    %234 = arith.extui %233 : vector<1x8x256xi1> to vector<1x8x256xi32>
    %c2_i32_60 = arith.constant 2 : i32
    %235 = vector.broadcast %c2_i32_60 : i32 to vector<1x8x256xi32>
    %236 = arith.cmpi sge, %231, %235 : vector<1x8x256xi32>
    %237 = arith.extui %236 : vector<1x8x256xi1> to vector<1x8x256xi32>
    %c9_i32_61 = arith.constant 9 : i32
    %238 = vector.broadcast %c9_i32_61 : i32 to vector<1x8x256xi32>
    %239 = arith.shli %237, %238 : vector<1x8x256xi32>
    %240 = arith.addi %234, %239 : vector<1x8x256xi32>
    %c3_i32_62 = arith.constant 3 : i32
    %241 = vector.broadcast %c3_i32_62 : i32 to vector<1x8x256xi32>
    %242 = arith.cmpi sge, %231, %241 : vector<1x8x256xi32>
    %243 = arith.extui %242 : vector<1x8x256xi1> to vector<1x8x256xi32>
    %c18_i32_63 = arith.constant 18 : i32
    %244 = vector.broadcast %c18_i32_63 : i32 to vector<1x8x256xi32>
    %245 = arith.shli %243, %244 : vector<1x8x256xi32>
    %246 = arith.addi %240, %245 : vector<1x8x256xi32>
    %c0_i32_64 = arith.constant 0 : i32
    %247 = vector.broadcast %c0_i32_64 : i32 to vector<1x8x256xi32>
    %248 = arith.select %227, %246, %247 : vector<1x8x256xi1>, vector<1x8x256xi32>
    %cst_65 = arith.constant dense<0> : vector<1x8xi32>
    %249 = vector.multi_reduction <add>, %248, %cst_65 [2] : vector<1x8x256xi32> to vector<1x8xi32>
    %250 = vector.shape_cast %249 : vector<1x8xi32> to vector<1x8x1xi32>
    %c511_i32_66 = arith.constant 511 : i32
    %251 = vector.broadcast %c511_i32_66 : i32 to vector<1x8x1xi32>
    %252 = arith.andi %250, %251 : vector<1x8x1xi32>
    %c9_i32_67 = arith.constant 9 : i32
    %253 = vector.broadcast %c9_i32_67 : i32 to vector<1x8x1xi32>
    %254 = arith.shrsi %250, %253 : vector<1x8x1xi32>
    %c511_i32_68 = arith.constant 511 : i32
    %255 = vector.broadcast %c511_i32_68 : i32 to vector<1x8x1xi32>
    %256 = arith.andi %254, %255 : vector<1x8x1xi32>
    %c18_i32_69 = arith.constant 18 : i32
    %257 = vector.broadcast %c18_i32_69 : i32 to vector<1x8x1xi32>
    %258 = arith.shrsi %250, %257 : vector<1x8x1xi32>
    %c511_i32_70 = arith.constant 511 : i32
    %259 = vector.broadcast %c511_i32_70 : i32 to vector<1x8x1xi32>
    %260 = arith.andi %258, %259 : vector<1x8x1xi32>
    %261 = arith.cmpi sge, %252, %220 : vector<1x8x1xi32>
    %262 = arith.cmpi sge, %256, %220 : vector<1x8x1xi32>
    %263 = arith.cmpi sge, %260, %220 : vector<1x8x1xi32>
    %264 = arith.extui %261 : vector<1x8x1xi1> to vector<1x8x1xi32>
    %265 = arith.extui %262 : vector<1x8x1xi1> to vector<1x8x1xi32>
    %266 = arith.addi %264, %265 : vector<1x8x1xi32>
    %267 = arith.extui %263 : vector<1x8x1xi1> to vector<1x8x1xi32>
    %268 = arith.addi %266, %267 : vector<1x8x1xi32>
    %269 = arith.select %261, %256, %252 : vector<1x8x1xi1>, vector<1x8x1xi32>
    %270 = arith.select %262, %260, %269 : vector<1x8x1xi1>, vector<1x8x1xi32>
    %c0_i32_71 = arith.constant 0 : i32
    %271 = vector.broadcast %c0_i32_71 : i32 to vector<1x8x1xi32>
    %272 = arith.select %263, %271, %270 : vector<1x8x1xi1>, vector<1x8x1xi32>
    %273 = arith.subi %220, %272 : vector<1x8x1xi32>
    %c22_i32_72 = arith.constant 22 : i32
    %274 = vector.broadcast %c22_i32_72 : i32 to vector<1x8x1xi32>
    %275 = arith.shli %268, %274 : vector<1x8x1xi32>
    %276 = arith.ori %223, %275 : vector<1x8x1xi32>
    %c-4194304_i32 = arith.constant -4194304 : i32
    %277 = vector.broadcast %c-4194304_i32 : i32 to vector<1x8x256xi32>
    %278 = arith.andi %9, %277 : vector<1x8x256xi32>
    %279 = vector.broadcast %276 : vector<1x8x1xi32> to vector<1x8x256xi32>
    %280 = arith.cmpi eq, %278, %279 : vector<1x8x256xi32>
    %c20_i32 = arith.constant 20 : i32
    %281 = vector.broadcast %c20_i32 : i32 to vector<1x8x256xi32>
    %282 = arith.shrsi %9, %281 : vector<1x8x256xi32>
    %c3_i32_73 = arith.constant 3 : i32
    %283 = vector.broadcast %c3_i32_73 : i32 to vector<1x8x256xi32>
    %284 = arith.andi %282, %283 : vector<1x8x256xi32>
    %c1_i32_74 = arith.constant 1 : i32
    %285 = vector.broadcast %c1_i32_74 : i32 to vector<1x8x256xi32>
    %286 = arith.cmpi sge, %284, %285 : vector<1x8x256xi32>
    %287 = arith.extui %286 : vector<1x8x256xi1> to vector<1x8x256xi32>
    %c2_i32_75 = arith.constant 2 : i32
    %288 = vector.broadcast %c2_i32_75 : i32 to vector<1x8x256xi32>
    %289 = arith.cmpi sge, %284, %288 : vector<1x8x256xi32>
    %290 = arith.extui %289 : vector<1x8x256xi1> to vector<1x8x256xi32>
    %c9_i32_76 = arith.constant 9 : i32
    %291 = vector.broadcast %c9_i32_76 : i32 to vector<1x8x256xi32>
    %292 = arith.shli %290, %291 : vector<1x8x256xi32>
    %293 = arith.addi %287, %292 : vector<1x8x256xi32>
    %c3_i32_77 = arith.constant 3 : i32
    %294 = vector.broadcast %c3_i32_77 : i32 to vector<1x8x256xi32>
    %295 = arith.cmpi sge, %284, %294 : vector<1x8x256xi32>
    %296 = arith.extui %295 : vector<1x8x256xi1> to vector<1x8x256xi32>
    %c18_i32_78 = arith.constant 18 : i32
    %297 = vector.broadcast %c18_i32_78 : i32 to vector<1x8x256xi32>
    %298 = arith.shli %296, %297 : vector<1x8x256xi32>
    %299 = arith.addi %293, %298 : vector<1x8x256xi32>
    %c0_i32_79 = arith.constant 0 : i32
    %300 = vector.broadcast %c0_i32_79 : i32 to vector<1x8x256xi32>
    %301 = arith.select %280, %299, %300 : vector<1x8x256xi1>, vector<1x8x256xi32>
    %cst_80 = arith.constant dense<0> : vector<1x8xi32>
    %302 = vector.multi_reduction <add>, %301, %cst_80 [2] : vector<1x8x256xi32> to vector<1x8xi32>
    %303 = vector.shape_cast %302 : vector<1x8xi32> to vector<1x8x1xi32>
    %c511_i32_81 = arith.constant 511 : i32
    %304 = vector.broadcast %c511_i32_81 : i32 to vector<1x8x1xi32>
    %305 = arith.andi %303, %304 : vector<1x8x1xi32>
    %c9_i32_82 = arith.constant 9 : i32
    %306 = vector.broadcast %c9_i32_82 : i32 to vector<1x8x1xi32>
    %307 = arith.shrsi %303, %306 : vector<1x8x1xi32>
    %c511_i32_83 = arith.constant 511 : i32
    %308 = vector.broadcast %c511_i32_83 : i32 to vector<1x8x1xi32>
    %309 = arith.andi %307, %308 : vector<1x8x1xi32>
    %c18_i32_84 = arith.constant 18 : i32
    %310 = vector.broadcast %c18_i32_84 : i32 to vector<1x8x1xi32>
    %311 = arith.shrsi %303, %310 : vector<1x8x1xi32>
    %c511_i32_85 = arith.constant 511 : i32
    %312 = vector.broadcast %c511_i32_85 : i32 to vector<1x8x1xi32>
    %313 = arith.andi %311, %312 : vector<1x8x1xi32>
    %314 = arith.cmpi sge, %305, %273 : vector<1x8x1xi32>
    %315 = arith.cmpi sge, %309, %273 : vector<1x8x1xi32>
    %316 = arith.cmpi sge, %313, %273 : vector<1x8x1xi32>
    %317 = arith.extui %314 : vector<1x8x1xi1> to vector<1x8x1xi32>
    %318 = arith.extui %315 : vector<1x8x1xi1> to vector<1x8x1xi32>
    %319 = arith.addi %317, %318 : vector<1x8x1xi32>
    %320 = arith.extui %316 : vector<1x8x1xi1> to vector<1x8x1xi32>
    %321 = arith.addi %319, %320 : vector<1x8x1xi32>
    %322 = arith.select %314, %309, %305 : vector<1x8x1xi1>, vector<1x8x1xi32>
    %323 = arith.select %315, %313, %322 : vector<1x8x1xi1>, vector<1x8x1xi32>
    %c0_i32_86 = arith.constant 0 : i32
    %324 = vector.broadcast %c0_i32_86 : i32 to vector<1x8x1xi32>
    %325 = arith.select %316, %324, %323 : vector<1x8x1xi1>, vector<1x8x1xi32>
    %326 = arith.subi %273, %325 : vector<1x8x1xi32>
    %c20_i32_87 = arith.constant 20 : i32
    %327 = vector.broadcast %c20_i32_87 : i32 to vector<1x8x1xi32>
    %328 = arith.shli %321, %327 : vector<1x8x1xi32>
    %329 = arith.ori %276, %328 : vector<1x8x1xi32>
    %c-1048576_i32 = arith.constant -1048576 : i32
    %330 = vector.broadcast %c-1048576_i32 : i32 to vector<1x8x256xi32>
    %331 = arith.andi %9, %330 : vector<1x8x256xi32>
    %332 = vector.broadcast %329 : vector<1x8x1xi32> to vector<1x8x256xi32>
    %333 = arith.cmpi eq, %331, %332 : vector<1x8x256xi32>
    %c18_i32_88 = arith.constant 18 : i32
    %334 = vector.broadcast %c18_i32_88 : i32 to vector<1x8x256xi32>
    %335 = arith.shrsi %9, %334 : vector<1x8x256xi32>
    %c3_i32_89 = arith.constant 3 : i32
    %336 = vector.broadcast %c3_i32_89 : i32 to vector<1x8x256xi32>
    %337 = arith.andi %335, %336 : vector<1x8x256xi32>
    %c1_i32_90 = arith.constant 1 : i32
    %338 = vector.broadcast %c1_i32_90 : i32 to vector<1x8x256xi32>
    %339 = arith.cmpi sge, %337, %338 : vector<1x8x256xi32>
    %340 = arith.extui %339 : vector<1x8x256xi1> to vector<1x8x256xi32>
    %c2_i32_91 = arith.constant 2 : i32
    %341 = vector.broadcast %c2_i32_91 : i32 to vector<1x8x256xi32>
    %342 = arith.cmpi sge, %337, %341 : vector<1x8x256xi32>
    %343 = arith.extui %342 : vector<1x8x256xi1> to vector<1x8x256xi32>
    %c9_i32_92 = arith.constant 9 : i32
    %344 = vector.broadcast %c9_i32_92 : i32 to vector<1x8x256xi32>
    %345 = arith.shli %343, %344 : vector<1x8x256xi32>
    %346 = arith.addi %340, %345 : vector<1x8x256xi32>
    %c3_i32_93 = arith.constant 3 : i32
    %347 = vector.broadcast %c3_i32_93 : i32 to vector<1x8x256xi32>
    %348 = arith.cmpi sge, %337, %347 : vector<1x8x256xi32>
    %349 = arith.extui %348 : vector<1x8x256xi1> to vector<1x8x256xi32>
    %c18_i32_94 = arith.constant 18 : i32
    %350 = vector.broadcast %c18_i32_94 : i32 to vector<1x8x256xi32>
    %351 = arith.shli %349, %350 : vector<1x8x256xi32>
    %352 = arith.addi %346, %351 : vector<1x8x256xi32>
    %c0_i32_95 = arith.constant 0 : i32
    %353 = vector.broadcast %c0_i32_95 : i32 to vector<1x8x256xi32>
    %354 = arith.select %333, %352, %353 : vector<1x8x256xi1>, vector<1x8x256xi32>
    %cst_96 = arith.constant dense<0> : vector<1x8xi32>
    %355 = vector.multi_reduction <add>, %354, %cst_96 [2] : vector<1x8x256xi32> to vector<1x8xi32>
    %356 = vector.shape_cast %355 : vector<1x8xi32> to vector<1x8x1xi32>
    %c511_i32_97 = arith.constant 511 : i32
    %357 = vector.broadcast %c511_i32_97 : i32 to vector<1x8x1xi32>
    %358 = arith.andi %356, %357 : vector<1x8x1xi32>
    %c9_i32_98 = arith.constant 9 : i32
    %359 = vector.broadcast %c9_i32_98 : i32 to vector<1x8x1xi32>
    %360 = arith.shrsi %356, %359 : vector<1x8x1xi32>
    %c511_i32_99 = arith.constant 511 : i32
    %361 = vector.broadcast %c511_i32_99 : i32 to vector<1x8x1xi32>
    %362 = arith.andi %360, %361 : vector<1x8x1xi32>
    %c18_i32_100 = arith.constant 18 : i32
    %363 = vector.broadcast %c18_i32_100 : i32 to vector<1x8x1xi32>
    %364 = arith.shrsi %356, %363 : vector<1x8x1xi32>
    %c511_i32_101 = arith.constant 511 : i32
    %365 = vector.broadcast %c511_i32_101 : i32 to vector<1x8x1xi32>
    %366 = arith.andi %364, %365 : vector<1x8x1xi32>
    %367 = arith.cmpi sge, %358, %326 : vector<1x8x1xi32>
    %368 = arith.cmpi sge, %362, %326 : vector<1x8x1xi32>
    %369 = arith.cmpi sge, %366, %326 : vector<1x8x1xi32>
    %370 = arith.extui %367 : vector<1x8x1xi1> to vector<1x8x1xi32>
    %371 = arith.extui %368 : vector<1x8x1xi1> to vector<1x8x1xi32>
    %372 = arith.addi %370, %371 : vector<1x8x1xi32>
    %373 = arith.extui %369 : vector<1x8x1xi1> to vector<1x8x1xi32>
    %374 = arith.addi %372, %373 : vector<1x8x1xi32>
    %375 = arith.select %367, %362, %358 : vector<1x8x1xi1>, vector<1x8x1xi32>
    %376 = arith.select %368, %366, %375 : vector<1x8x1xi1>, vector<1x8x1xi32>
    %c0_i32_102 = arith.constant 0 : i32
    %377 = vector.broadcast %c0_i32_102 : i32 to vector<1x8x1xi32>
    %378 = arith.select %369, %377, %376 : vector<1x8x1xi1>, vector<1x8x1xi32>
    %379 = arith.subi %326, %378 : vector<1x8x1xi32>
    %c18_i32_103 = arith.constant 18 : i32
    %380 = vector.broadcast %c18_i32_103 : i32 to vector<1x8x1xi32>
    %381 = arith.shli %374, %380 : vector<1x8x1xi32>
    %382 = arith.ori %329, %381 : vector<1x8x1xi32>
    %c-262144_i32 = arith.constant -262144 : i32
    %383 = vector.broadcast %c-262144_i32 : i32 to vector<1x8x256xi32>
    %384 = arith.andi %9, %383 : vector<1x8x256xi32>
    %385 = vector.broadcast %382 : vector<1x8x1xi32> to vector<1x8x256xi32>
    %386 = arith.cmpi eq, %384, %385 : vector<1x8x256xi32>
    %c16_i32 = arith.constant 16 : i32
    %387 = vector.broadcast %c16_i32 : i32 to vector<1x8x256xi32>
    %388 = arith.shrsi %9, %387 : vector<1x8x256xi32>
    %c3_i32_104 = arith.constant 3 : i32
    %389 = vector.broadcast %c3_i32_104 : i32 to vector<1x8x256xi32>
    %390 = arith.andi %388, %389 : vector<1x8x256xi32>
    %c1_i32_105 = arith.constant 1 : i32
    %391 = vector.broadcast %c1_i32_105 : i32 to vector<1x8x256xi32>
    %392 = arith.cmpi sge, %390, %391 : vector<1x8x256xi32>
    %393 = arith.extui %392 : vector<1x8x256xi1> to vector<1x8x256xi32>
    %c2_i32_106 = arith.constant 2 : i32
    %394 = vector.broadcast %c2_i32_106 : i32 to vector<1x8x256xi32>
    %395 = arith.cmpi sge, %390, %394 : vector<1x8x256xi32>
    %396 = arith.extui %395 : vector<1x8x256xi1> to vector<1x8x256xi32>
    %c9_i32_107 = arith.constant 9 : i32
    %397 = vector.broadcast %c9_i32_107 : i32 to vector<1x8x256xi32>
    %398 = arith.shli %396, %397 : vector<1x8x256xi32>
    %399 = arith.addi %393, %398 : vector<1x8x256xi32>
    %c3_i32_108 = arith.constant 3 : i32
    %400 = vector.broadcast %c3_i32_108 : i32 to vector<1x8x256xi32>
    %401 = arith.cmpi sge, %390, %400 : vector<1x8x256xi32>
    %402 = arith.extui %401 : vector<1x8x256xi1> to vector<1x8x256xi32>
    %c18_i32_109 = arith.constant 18 : i32
    %403 = vector.broadcast %c18_i32_109 : i32 to vector<1x8x256xi32>
    %404 = arith.shli %402, %403 : vector<1x8x256xi32>
    %405 = arith.addi %399, %404 : vector<1x8x256xi32>
    %c0_i32_110 = arith.constant 0 : i32
    %406 = vector.broadcast %c0_i32_110 : i32 to vector<1x8x256xi32>
    %407 = arith.select %386, %405, %406 : vector<1x8x256xi1>, vector<1x8x256xi32>
    %cst_111 = arith.constant dense<0> : vector<1x8xi32>
    %408 = vector.multi_reduction <add>, %407, %cst_111 [2] : vector<1x8x256xi32> to vector<1x8xi32>
    %409 = vector.shape_cast %408 : vector<1x8xi32> to vector<1x8x1xi32>
    %c511_i32_112 = arith.constant 511 : i32
    %410 = vector.broadcast %c511_i32_112 : i32 to vector<1x8x1xi32>
    %411 = arith.andi %409, %410 : vector<1x8x1xi32>
    %c9_i32_113 = arith.constant 9 : i32
    %412 = vector.broadcast %c9_i32_113 : i32 to vector<1x8x1xi32>
    %413 = arith.shrsi %409, %412 : vector<1x8x1xi32>
    %c511_i32_114 = arith.constant 511 : i32
    %414 = vector.broadcast %c511_i32_114 : i32 to vector<1x8x1xi32>
    %415 = arith.andi %413, %414 : vector<1x8x1xi32>
    %c18_i32_115 = arith.constant 18 : i32
    %416 = vector.broadcast %c18_i32_115 : i32 to vector<1x8x1xi32>
    %417 = arith.shrsi %409, %416 : vector<1x8x1xi32>
    %c511_i32_116 = arith.constant 511 : i32
    %418 = vector.broadcast %c511_i32_116 : i32 to vector<1x8x1xi32>
    %419 = arith.andi %417, %418 : vector<1x8x1xi32>
    %420 = arith.cmpi sge, %411, %379 : vector<1x8x1xi32>
    %421 = arith.cmpi sge, %415, %379 : vector<1x8x1xi32>
    %422 = arith.cmpi sge, %419, %379 : vector<1x8x1xi32>
    %423 = arith.extui %420 : vector<1x8x1xi1> to vector<1x8x1xi32>
    %424 = arith.extui %421 : vector<1x8x1xi1> to vector<1x8x1xi32>
    %425 = arith.addi %423, %424 : vector<1x8x1xi32>
    %426 = arith.extui %422 : vector<1x8x1xi1> to vector<1x8x1xi32>
    %427 = arith.addi %425, %426 : vector<1x8x1xi32>
    %428 = arith.select %420, %415, %411 : vector<1x8x1xi1>, vector<1x8x1xi32>
    %429 = arith.select %421, %419, %428 : vector<1x8x1xi1>, vector<1x8x1xi32>
    %c0_i32_117 = arith.constant 0 : i32
    %430 = vector.broadcast %c0_i32_117 : i32 to vector<1x8x1xi32>
    %431 = arith.select %422, %430, %429 : vector<1x8x1xi1>, vector<1x8x1xi32>
    %432 = arith.subi %379, %431 : vector<1x8x1xi32>
    %c16_i32_118 = arith.constant 16 : i32
    %433 = vector.broadcast %c16_i32_118 : i32 to vector<1x8x1xi32>
    %434 = arith.shli %427, %433 : vector<1x8x1xi32>
    %435 = arith.ori %382, %434 : vector<1x8x1xi32>
    %c-65536_i32 = arith.constant -65536 : i32
    %436 = vector.broadcast %c-65536_i32 : i32 to vector<1x8x256xi32>
    %437 = arith.andi %9, %436 : vector<1x8x256xi32>
    %438 = vector.broadcast %435 : vector<1x8x1xi32> to vector<1x8x256xi32>
    %439 = arith.cmpi eq, %437, %438 : vector<1x8x256xi32>
    %c14_i32 = arith.constant 14 : i32
    %440 = vector.broadcast %c14_i32 : i32 to vector<1x8x256xi32>
    %441 = arith.shrsi %9, %440 : vector<1x8x256xi32>
    %c3_i32_119 = arith.constant 3 : i32
    %442 = vector.broadcast %c3_i32_119 : i32 to vector<1x8x256xi32>
    %443 = arith.andi %441, %442 : vector<1x8x256xi32>
    %c1_i32_120 = arith.constant 1 : i32
    %444 = vector.broadcast %c1_i32_120 : i32 to vector<1x8x256xi32>
    %445 = arith.cmpi sge, %443, %444 : vector<1x8x256xi32>
    %446 = arith.extui %445 : vector<1x8x256xi1> to vector<1x8x256xi32>
    %c2_i32_121 = arith.constant 2 : i32
    %447 = vector.broadcast %c2_i32_121 : i32 to vector<1x8x256xi32>
    %448 = arith.cmpi sge, %443, %447 : vector<1x8x256xi32>
    %449 = arith.extui %448 : vector<1x8x256xi1> to vector<1x8x256xi32>
    %c9_i32_122 = arith.constant 9 : i32
    %450 = vector.broadcast %c9_i32_122 : i32 to vector<1x8x256xi32>
    %451 = arith.shli %449, %450 : vector<1x8x256xi32>
    %452 = arith.addi %446, %451 : vector<1x8x256xi32>
    %c3_i32_123 = arith.constant 3 : i32
    %453 = vector.broadcast %c3_i32_123 : i32 to vector<1x8x256xi32>
    %454 = arith.cmpi sge, %443, %453 : vector<1x8x256xi32>
    %455 = arith.extui %454 : vector<1x8x256xi1> to vector<1x8x256xi32>
    %c18_i32_124 = arith.constant 18 : i32
    %456 = vector.broadcast %c18_i32_124 : i32 to vector<1x8x256xi32>
    %457 = arith.shli %455, %456 : vector<1x8x256xi32>
    %458 = arith.addi %452, %457 : vector<1x8x256xi32>
    %c0_i32_125 = arith.constant 0 : i32
    %459 = vector.broadcast %c0_i32_125 : i32 to vector<1x8x256xi32>
    %460 = arith.select %439, %458, %459 : vector<1x8x256xi1>, vector<1x8x256xi32>
    %cst_126 = arith.constant dense<0> : vector<1x8xi32>
    %461 = vector.multi_reduction <add>, %460, %cst_126 [2] : vector<1x8x256xi32> to vector<1x8xi32>
    %462 = vector.shape_cast %461 : vector<1x8xi32> to vector<1x8x1xi32>
    %c511_i32_127 = arith.constant 511 : i32
    %463 = vector.broadcast %c511_i32_127 : i32 to vector<1x8x1xi32>
    %464 = arith.andi %462, %463 : vector<1x8x1xi32>
    %c9_i32_128 = arith.constant 9 : i32
    %465 = vector.broadcast %c9_i32_128 : i32 to vector<1x8x1xi32>
    %466 = arith.shrsi %462, %465 : vector<1x8x1xi32>
    %c511_i32_129 = arith.constant 511 : i32
    %467 = vector.broadcast %c511_i32_129 : i32 to vector<1x8x1xi32>
    %468 = arith.andi %466, %467 : vector<1x8x1xi32>
    %c18_i32_130 = arith.constant 18 : i32
    %469 = vector.broadcast %c18_i32_130 : i32 to vector<1x8x1xi32>
    %470 = arith.shrsi %462, %469 : vector<1x8x1xi32>
    %c511_i32_131 = arith.constant 511 : i32
    %471 = vector.broadcast %c511_i32_131 : i32 to vector<1x8x1xi32>
    %472 = arith.andi %470, %471 : vector<1x8x1xi32>
    %473 = arith.cmpi sge, %464, %432 : vector<1x8x1xi32>
    %474 = arith.cmpi sge, %468, %432 : vector<1x8x1xi32>
    %475 = arith.cmpi sge, %472, %432 : vector<1x8x1xi32>
    %476 = arith.extui %473 : vector<1x8x1xi1> to vector<1x8x1xi32>
    %477 = arith.extui %474 : vector<1x8x1xi1> to vector<1x8x1xi32>
    %478 = arith.addi %476, %477 : vector<1x8x1xi32>
    %479 = arith.extui %475 : vector<1x8x1xi1> to vector<1x8x1xi32>
    %480 = arith.addi %478, %479 : vector<1x8x1xi32>
    %481 = arith.select %473, %468, %464 : vector<1x8x1xi1>, vector<1x8x1xi32>
    %482 = arith.select %474, %472, %481 : vector<1x8x1xi1>, vector<1x8x1xi32>
    %c0_i32_132 = arith.constant 0 : i32
    %483 = vector.broadcast %c0_i32_132 : i32 to vector<1x8x1xi32>
    %484 = arith.select %475, %483, %482 : vector<1x8x1xi1>, vector<1x8x1xi32>
    %485 = arith.subi %432, %484 : vector<1x8x1xi32>
    %c14_i32_133 = arith.constant 14 : i32
    %486 = vector.broadcast %c14_i32_133 : i32 to vector<1x8x1xi32>
    %487 = arith.shli %480, %486 : vector<1x8x1xi32>
    %488 = arith.ori %435, %487 : vector<1x8x1xi32>
    %c-16384_i32 = arith.constant -16384 : i32
    %489 = vector.broadcast %c-16384_i32 : i32 to vector<1x8x256xi32>
    %490 = arith.andi %9, %489 : vector<1x8x256xi32>
    %491 = vector.broadcast %488 : vector<1x8x1xi32> to vector<1x8x256xi32>
    %492 = arith.cmpi eq, %490, %491 : vector<1x8x256xi32>
    %c12_i32 = arith.constant 12 : i32
    %493 = vector.broadcast %c12_i32 : i32 to vector<1x8x256xi32>
    %494 = arith.shrsi %9, %493 : vector<1x8x256xi32>
    %c3_i32_134 = arith.constant 3 : i32
    %495 = vector.broadcast %c3_i32_134 : i32 to vector<1x8x256xi32>
    %496 = arith.andi %494, %495 : vector<1x8x256xi32>
    %c1_i32_135 = arith.constant 1 : i32
    %497 = vector.broadcast %c1_i32_135 : i32 to vector<1x8x256xi32>
    %498 = arith.cmpi sge, %496, %497 : vector<1x8x256xi32>
    %499 = arith.extui %498 : vector<1x8x256xi1> to vector<1x8x256xi32>
    %c2_i32_136 = arith.constant 2 : i32
    %500 = vector.broadcast %c2_i32_136 : i32 to vector<1x8x256xi32>
    %501 = arith.cmpi sge, %496, %500 : vector<1x8x256xi32>
    %502 = arith.extui %501 : vector<1x8x256xi1> to vector<1x8x256xi32>
    %c9_i32_137 = arith.constant 9 : i32
    %503 = vector.broadcast %c9_i32_137 : i32 to vector<1x8x256xi32>
    %504 = arith.shli %502, %503 : vector<1x8x256xi32>
    %505 = arith.addi %499, %504 : vector<1x8x256xi32>
    %c3_i32_138 = arith.constant 3 : i32
    %506 = vector.broadcast %c3_i32_138 : i32 to vector<1x8x256xi32>
    %507 = arith.cmpi sge, %496, %506 : vector<1x8x256xi32>
    %508 = arith.extui %507 : vector<1x8x256xi1> to vector<1x8x256xi32>
    %c18_i32_139 = arith.constant 18 : i32
    %509 = vector.broadcast %c18_i32_139 : i32 to vector<1x8x256xi32>
    %510 = arith.shli %508, %509 : vector<1x8x256xi32>
    %511 = arith.addi %505, %510 : vector<1x8x256xi32>
    %c0_i32_140 = arith.constant 0 : i32
    %512 = vector.broadcast %c0_i32_140 : i32 to vector<1x8x256xi32>
    %513 = arith.select %492, %511, %512 : vector<1x8x256xi1>, vector<1x8x256xi32>
    %cst_141 = arith.constant dense<0> : vector<1x8xi32>
    %514 = vector.multi_reduction <add>, %513, %cst_141 [2] : vector<1x8x256xi32> to vector<1x8xi32>
    %515 = vector.shape_cast %514 : vector<1x8xi32> to vector<1x8x1xi32>
    %c511_i32_142 = arith.constant 511 : i32
    %516 = vector.broadcast %c511_i32_142 : i32 to vector<1x8x1xi32>
    %517 = arith.andi %515, %516 : vector<1x8x1xi32>
    %c9_i32_143 = arith.constant 9 : i32
    %518 = vector.broadcast %c9_i32_143 : i32 to vector<1x8x1xi32>
    %519 = arith.shrsi %515, %518 : vector<1x8x1xi32>
    %c511_i32_144 = arith.constant 511 : i32
    %520 = vector.broadcast %c511_i32_144 : i32 to vector<1x8x1xi32>
    %521 = arith.andi %519, %520 : vector<1x8x1xi32>
    %c18_i32_145 = arith.constant 18 : i32
    %522 = vector.broadcast %c18_i32_145 : i32 to vector<1x8x1xi32>
    %523 = arith.shrsi %515, %522 : vector<1x8x1xi32>
    %c511_i32_146 = arith.constant 511 : i32
    %524 = vector.broadcast %c511_i32_146 : i32 to vector<1x8x1xi32>
    %525 = arith.andi %523, %524 : vector<1x8x1xi32>
    %526 = arith.cmpi sge, %517, %485 : vector<1x8x1xi32>
    %527 = arith.cmpi sge, %521, %485 : vector<1x8x1xi32>
    %528 = arith.cmpi sge, %525, %485 : vector<1x8x1xi32>
    %529 = arith.extui %526 : vector<1x8x1xi1> to vector<1x8x1xi32>
    %530 = arith.extui %527 : vector<1x8x1xi1> to vector<1x8x1xi32>
    %531 = arith.addi %529, %530 : vector<1x8x1xi32>
    %532 = arith.extui %528 : vector<1x8x1xi1> to vector<1x8x1xi32>
    %533 = arith.addi %531, %532 : vector<1x8x1xi32>
    %534 = arith.select %526, %521, %517 : vector<1x8x1xi1>, vector<1x8x1xi32>
    %535 = arith.select %527, %525, %534 : vector<1x8x1xi1>, vector<1x8x1xi32>
    %c0_i32_147 = arith.constant 0 : i32
    %536 = vector.broadcast %c0_i32_147 : i32 to vector<1x8x1xi32>
    %537 = arith.select %528, %536, %535 : vector<1x8x1xi1>, vector<1x8x1xi32>
    %538 = arith.subi %485, %537 : vector<1x8x1xi32>
    %c12_i32_148 = arith.constant 12 : i32
    %539 = vector.broadcast %c12_i32_148 : i32 to vector<1x8x1xi32>
    %540 = arith.shli %533, %539 : vector<1x8x1xi32>
    %541 = arith.ori %488, %540 : vector<1x8x1xi32>
    %c-4096_i32 = arith.constant -4096 : i32
    %542 = vector.broadcast %c-4096_i32 : i32 to vector<1x8x256xi32>
    %543 = arith.andi %9, %542 : vector<1x8x256xi32>
    %544 = vector.broadcast %541 : vector<1x8x1xi32> to vector<1x8x256xi32>
    %545 = arith.cmpi eq, %543, %544 : vector<1x8x256xi32>
    %c10_i32 = arith.constant 10 : i32
    %546 = vector.broadcast %c10_i32 : i32 to vector<1x8x256xi32>
    %547 = arith.shrsi %9, %546 : vector<1x8x256xi32>
    %c3_i32_149 = arith.constant 3 : i32
    %548 = vector.broadcast %c3_i32_149 : i32 to vector<1x8x256xi32>
    %549 = arith.andi %547, %548 : vector<1x8x256xi32>
    %c1_i32_150 = arith.constant 1 : i32
    %550 = vector.broadcast %c1_i32_150 : i32 to vector<1x8x256xi32>
    %551 = arith.cmpi sge, %549, %550 : vector<1x8x256xi32>
    %552 = arith.extui %551 : vector<1x8x256xi1> to vector<1x8x256xi32>
    %c2_i32_151 = arith.constant 2 : i32
    %553 = vector.broadcast %c2_i32_151 : i32 to vector<1x8x256xi32>
    %554 = arith.cmpi sge, %549, %553 : vector<1x8x256xi32>
    %555 = arith.extui %554 : vector<1x8x256xi1> to vector<1x8x256xi32>
    %c9_i32_152 = arith.constant 9 : i32
    %556 = vector.broadcast %c9_i32_152 : i32 to vector<1x8x256xi32>
    %557 = arith.shli %555, %556 : vector<1x8x256xi32>
    %558 = arith.addi %552, %557 : vector<1x8x256xi32>
    %c3_i32_153 = arith.constant 3 : i32
    %559 = vector.broadcast %c3_i32_153 : i32 to vector<1x8x256xi32>
    %560 = arith.cmpi sge, %549, %559 : vector<1x8x256xi32>
    %561 = arith.extui %560 : vector<1x8x256xi1> to vector<1x8x256xi32>
    %c18_i32_154 = arith.constant 18 : i32
    %562 = vector.broadcast %c18_i32_154 : i32 to vector<1x8x256xi32>
    %563 = arith.shli %561, %562 : vector<1x8x256xi32>
    %564 = arith.addi %558, %563 : vector<1x8x256xi32>
    %c0_i32_155 = arith.constant 0 : i32
    %565 = vector.broadcast %c0_i32_155 : i32 to vector<1x8x256xi32>
    %566 = arith.select %545, %564, %565 : vector<1x8x256xi1>, vector<1x8x256xi32>
    %cst_156 = arith.constant dense<0> : vector<1x8xi32>
    %567 = vector.multi_reduction <add>, %566, %cst_156 [2] : vector<1x8x256xi32> to vector<1x8xi32>
    %568 = vector.shape_cast %567 : vector<1x8xi32> to vector<1x8x1xi32>
    %c511_i32_157 = arith.constant 511 : i32
    %569 = vector.broadcast %c511_i32_157 : i32 to vector<1x8x1xi32>
    %570 = arith.andi %568, %569 : vector<1x8x1xi32>
    %c9_i32_158 = arith.constant 9 : i32
    %571 = vector.broadcast %c9_i32_158 : i32 to vector<1x8x1xi32>
    %572 = arith.shrsi %568, %571 : vector<1x8x1xi32>
    %c511_i32_159 = arith.constant 511 : i32
    %573 = vector.broadcast %c511_i32_159 : i32 to vector<1x8x1xi32>
    %574 = arith.andi %572, %573 : vector<1x8x1xi32>
    %c18_i32_160 = arith.constant 18 : i32
    %575 = vector.broadcast %c18_i32_160 : i32 to vector<1x8x1xi32>
    %576 = arith.shrsi %568, %575 : vector<1x8x1xi32>
    %c511_i32_161 = arith.constant 511 : i32
    %577 = vector.broadcast %c511_i32_161 : i32 to vector<1x8x1xi32>
    %578 = arith.andi %576, %577 : vector<1x8x1xi32>
    %579 = arith.cmpi sge, %570, %538 : vector<1x8x1xi32>
    %580 = arith.cmpi sge, %574, %538 : vector<1x8x1xi32>
    %581 = arith.cmpi sge, %578, %538 : vector<1x8x1xi32>
    %582 = arith.extui %579 : vector<1x8x1xi1> to vector<1x8x1xi32>
    %583 = arith.extui %580 : vector<1x8x1xi1> to vector<1x8x1xi32>
    %584 = arith.addi %582, %583 : vector<1x8x1xi32>
    %585 = arith.extui %581 : vector<1x8x1xi1> to vector<1x8x1xi32>
    %586 = arith.addi %584, %585 : vector<1x8x1xi32>
    %587 = arith.select %579, %574, %570 : vector<1x8x1xi1>, vector<1x8x1xi32>
    %588 = arith.select %580, %578, %587 : vector<1x8x1xi1>, vector<1x8x1xi32>
    %c0_i32_162 = arith.constant 0 : i32
    %589 = vector.broadcast %c0_i32_162 : i32 to vector<1x8x1xi32>
    %590 = arith.select %581, %589, %588 : vector<1x8x1xi1>, vector<1x8x1xi32>
    %591 = arith.subi %538, %590 : vector<1x8x1xi32>
    %c10_i32_163 = arith.constant 10 : i32
    %592 = vector.broadcast %c10_i32_163 : i32 to vector<1x8x1xi32>
    %593 = arith.shli %586, %592 : vector<1x8x1xi32>
    %594 = arith.ori %541, %593 : vector<1x8x1xi32>
    %c-1024_i32 = arith.constant -1024 : i32
    %595 = vector.broadcast %c-1024_i32 : i32 to vector<1x8x256xi32>
    %596 = arith.andi %9, %595 : vector<1x8x256xi32>
    %597 = vector.broadcast %594 : vector<1x8x1xi32> to vector<1x8x256xi32>
    %598 = arith.cmpi eq, %596, %597 : vector<1x8x256xi32>
    %c8_i32 = arith.constant 8 : i32
    %599 = vector.broadcast %c8_i32 : i32 to vector<1x8x256xi32>
    %600 = arith.shrsi %9, %599 : vector<1x8x256xi32>
    %c3_i32_164 = arith.constant 3 : i32
    %601 = vector.broadcast %c3_i32_164 : i32 to vector<1x8x256xi32>
    %602 = arith.andi %600, %601 : vector<1x8x256xi32>
    %c1_i32_165 = arith.constant 1 : i32
    %603 = vector.broadcast %c1_i32_165 : i32 to vector<1x8x256xi32>
    %604 = arith.cmpi sge, %602, %603 : vector<1x8x256xi32>
    %605 = arith.extui %604 : vector<1x8x256xi1> to vector<1x8x256xi32>
    %c2_i32_166 = arith.constant 2 : i32
    %606 = vector.broadcast %c2_i32_166 : i32 to vector<1x8x256xi32>
    %607 = arith.cmpi sge, %602, %606 : vector<1x8x256xi32>
    %608 = arith.extui %607 : vector<1x8x256xi1> to vector<1x8x256xi32>
    %c9_i32_167 = arith.constant 9 : i32
    %609 = vector.broadcast %c9_i32_167 : i32 to vector<1x8x256xi32>
    %610 = arith.shli %608, %609 : vector<1x8x256xi32>
    %611 = arith.addi %605, %610 : vector<1x8x256xi32>
    %c3_i32_168 = arith.constant 3 : i32
    %612 = vector.broadcast %c3_i32_168 : i32 to vector<1x8x256xi32>
    %613 = arith.cmpi sge, %602, %612 : vector<1x8x256xi32>
    %614 = arith.extui %613 : vector<1x8x256xi1> to vector<1x8x256xi32>
    %c18_i32_169 = arith.constant 18 : i32
    %615 = vector.broadcast %c18_i32_169 : i32 to vector<1x8x256xi32>
    %616 = arith.shli %614, %615 : vector<1x8x256xi32>
    %617 = arith.addi %611, %616 : vector<1x8x256xi32>
    %c0_i32_170 = arith.constant 0 : i32
    %618 = vector.broadcast %c0_i32_170 : i32 to vector<1x8x256xi32>
    %619 = arith.select %598, %617, %618 : vector<1x8x256xi1>, vector<1x8x256xi32>
    %cst_171 = arith.constant dense<0> : vector<1x8xi32>
    %620 = vector.multi_reduction <add>, %619, %cst_171 [2] : vector<1x8x256xi32> to vector<1x8xi32>
    %621 = vector.shape_cast %620 : vector<1x8xi32> to vector<1x8x1xi32>
    %c511_i32_172 = arith.constant 511 : i32
    %622 = vector.broadcast %c511_i32_172 : i32 to vector<1x8x1xi32>
    %623 = arith.andi %621, %622 : vector<1x8x1xi32>
    %c9_i32_173 = arith.constant 9 : i32
    %624 = vector.broadcast %c9_i32_173 : i32 to vector<1x8x1xi32>
    %625 = arith.shrsi %621, %624 : vector<1x8x1xi32>
    %c511_i32_174 = arith.constant 511 : i32
    %626 = vector.broadcast %c511_i32_174 : i32 to vector<1x8x1xi32>
    %627 = arith.andi %625, %626 : vector<1x8x1xi32>
    %c18_i32_175 = arith.constant 18 : i32
    %628 = vector.broadcast %c18_i32_175 : i32 to vector<1x8x1xi32>
    %629 = arith.shrsi %621, %628 : vector<1x8x1xi32>
    %c511_i32_176 = arith.constant 511 : i32
    %630 = vector.broadcast %c511_i32_176 : i32 to vector<1x8x1xi32>
    %631 = arith.andi %629, %630 : vector<1x8x1xi32>
    %632 = arith.cmpi sge, %623, %591 : vector<1x8x1xi32>
    %633 = arith.cmpi sge, %627, %591 : vector<1x8x1xi32>
    %634 = arith.cmpi sge, %631, %591 : vector<1x8x1xi32>
    %635 = arith.extui %632 : vector<1x8x1xi1> to vector<1x8x1xi32>
    %636 = arith.extui %633 : vector<1x8x1xi1> to vector<1x8x1xi32>
    %637 = arith.addi %635, %636 : vector<1x8x1xi32>
    %638 = arith.extui %634 : vector<1x8x1xi1> to vector<1x8x1xi32>
    %639 = arith.addi %637, %638 : vector<1x8x1xi32>
    %640 = arith.select %632, %627, %623 : vector<1x8x1xi1>, vector<1x8x1xi32>
    %641 = arith.select %633, %631, %640 : vector<1x8x1xi1>, vector<1x8x1xi32>
    %c0_i32_177 = arith.constant 0 : i32
    %642 = vector.broadcast %c0_i32_177 : i32 to vector<1x8x1xi32>
    %643 = arith.select %634, %642, %641 : vector<1x8x1xi1>, vector<1x8x1xi32>
    %644 = arith.subi %591, %643 : vector<1x8x1xi32>
    %c8_i32_178 = arith.constant 8 : i32
    %645 = vector.broadcast %c8_i32_178 : i32 to vector<1x8x1xi32>
    %646 = arith.shli %639, %645 : vector<1x8x1xi32>
    %647 = arith.ori %594, %646 : vector<1x8x1xi32>
    %c-256_i32 = arith.constant -256 : i32
    %648 = vector.broadcast %c-256_i32 : i32 to vector<1x8x256xi32>
    %649 = arith.andi %9, %648 : vector<1x8x256xi32>
    %650 = vector.broadcast %647 : vector<1x8x1xi32> to vector<1x8x256xi32>
    %651 = arith.cmpi eq, %649, %650 : vector<1x8x256xi32>
    %c6_i32 = arith.constant 6 : i32
    %652 = vector.broadcast %c6_i32 : i32 to vector<1x8x256xi32>
    %653 = arith.shrsi %9, %652 : vector<1x8x256xi32>
    %c3_i32_179 = arith.constant 3 : i32
    %654 = vector.broadcast %c3_i32_179 : i32 to vector<1x8x256xi32>
    %655 = arith.andi %653, %654 : vector<1x8x256xi32>
    %c1_i32_180 = arith.constant 1 : i32
    %656 = vector.broadcast %c1_i32_180 : i32 to vector<1x8x256xi32>
    %657 = arith.cmpi sge, %655, %656 : vector<1x8x256xi32>
    %658 = arith.extui %657 : vector<1x8x256xi1> to vector<1x8x256xi32>
    %c2_i32_181 = arith.constant 2 : i32
    %659 = vector.broadcast %c2_i32_181 : i32 to vector<1x8x256xi32>
    %660 = arith.cmpi sge, %655, %659 : vector<1x8x256xi32>
    %661 = arith.extui %660 : vector<1x8x256xi1> to vector<1x8x256xi32>
    %c9_i32_182 = arith.constant 9 : i32
    %662 = vector.broadcast %c9_i32_182 : i32 to vector<1x8x256xi32>
    %663 = arith.shli %661, %662 : vector<1x8x256xi32>
    %664 = arith.addi %658, %663 : vector<1x8x256xi32>
    %c3_i32_183 = arith.constant 3 : i32
    %665 = vector.broadcast %c3_i32_183 : i32 to vector<1x8x256xi32>
    %666 = arith.cmpi sge, %655, %665 : vector<1x8x256xi32>
    %667 = arith.extui %666 : vector<1x8x256xi1> to vector<1x8x256xi32>
    %c18_i32_184 = arith.constant 18 : i32
    %668 = vector.broadcast %c18_i32_184 : i32 to vector<1x8x256xi32>
    %669 = arith.shli %667, %668 : vector<1x8x256xi32>
    %670 = arith.addi %664, %669 : vector<1x8x256xi32>
    %c0_i32_185 = arith.constant 0 : i32
    %671 = vector.broadcast %c0_i32_185 : i32 to vector<1x8x256xi32>
    %672 = arith.select %651, %670, %671 : vector<1x8x256xi1>, vector<1x8x256xi32>
    %cst_186 = arith.constant dense<0> : vector<1x8xi32>
    %673 = vector.multi_reduction <add>, %672, %cst_186 [2] : vector<1x8x256xi32> to vector<1x8xi32>
    %674 = vector.shape_cast %673 : vector<1x8xi32> to vector<1x8x1xi32>
    %c511_i32_187 = arith.constant 511 : i32
    %675 = vector.broadcast %c511_i32_187 : i32 to vector<1x8x1xi32>
    %676 = arith.andi %674, %675 : vector<1x8x1xi32>
    %c9_i32_188 = arith.constant 9 : i32
    %677 = vector.broadcast %c9_i32_188 : i32 to vector<1x8x1xi32>
    %678 = arith.shrsi %674, %677 : vector<1x8x1xi32>
    %c511_i32_189 = arith.constant 511 : i32
    %679 = vector.broadcast %c511_i32_189 : i32 to vector<1x8x1xi32>
    %680 = arith.andi %678, %679 : vector<1x8x1xi32>
    %c18_i32_190 = arith.constant 18 : i32
    %681 = vector.broadcast %c18_i32_190 : i32 to vector<1x8x1xi32>
    %682 = arith.shrsi %674, %681 : vector<1x8x1xi32>
    %c511_i32_191 = arith.constant 511 : i32
    %683 = vector.broadcast %c511_i32_191 : i32 to vector<1x8x1xi32>
    %684 = arith.andi %682, %683 : vector<1x8x1xi32>
    %685 = arith.cmpi sge, %676, %644 : vector<1x8x1xi32>
    %686 = arith.cmpi sge, %680, %644 : vector<1x8x1xi32>
    %687 = arith.cmpi sge, %684, %644 : vector<1x8x1xi32>
    %688 = arith.extui %685 : vector<1x8x1xi1> to vector<1x8x1xi32>
    %689 = arith.extui %686 : vector<1x8x1xi1> to vector<1x8x1xi32>
    %690 = arith.addi %688, %689 : vector<1x8x1xi32>
    %691 = arith.extui %687 : vector<1x8x1xi1> to vector<1x8x1xi32>
    %692 = arith.addi %690, %691 : vector<1x8x1xi32>
    %693 = arith.select %685, %680, %676 : vector<1x8x1xi1>, vector<1x8x1xi32>
    %694 = arith.select %686, %684, %693 : vector<1x8x1xi1>, vector<1x8x1xi32>
    %c0_i32_192 = arith.constant 0 : i32
    %695 = vector.broadcast %c0_i32_192 : i32 to vector<1x8x1xi32>
    %696 = arith.select %687, %695, %694 : vector<1x8x1xi1>, vector<1x8x1xi32>
    %697 = arith.subi %644, %696 : vector<1x8x1xi32>
    %c6_i32_193 = arith.constant 6 : i32
    %698 = vector.broadcast %c6_i32_193 : i32 to vector<1x8x1xi32>
    %699 = arith.shli %692, %698 : vector<1x8x1xi32>
    %700 = arith.ori %647, %699 : vector<1x8x1xi32>
    %c-64_i32 = arith.constant -64 : i32
    %701 = vector.broadcast %c-64_i32 : i32 to vector<1x8x256xi32>
    %702 = arith.andi %9, %701 : vector<1x8x256xi32>
    %703 = vector.broadcast %700 : vector<1x8x1xi32> to vector<1x8x256xi32>
    %704 = arith.cmpi eq, %702, %703 : vector<1x8x256xi32>
    %c4_i32 = arith.constant 4 : i32
    %705 = vector.broadcast %c4_i32 : i32 to vector<1x8x256xi32>
    %706 = arith.shrsi %9, %705 : vector<1x8x256xi32>
    %c3_i32_194 = arith.constant 3 : i32
    %707 = vector.broadcast %c3_i32_194 : i32 to vector<1x8x256xi32>
    %708 = arith.andi %706, %707 : vector<1x8x256xi32>
    %c1_i32_195 = arith.constant 1 : i32
    %709 = vector.broadcast %c1_i32_195 : i32 to vector<1x8x256xi32>
    %710 = arith.cmpi sge, %708, %709 : vector<1x8x256xi32>
    %711 = arith.extui %710 : vector<1x8x256xi1> to vector<1x8x256xi32>
    %c2_i32_196 = arith.constant 2 : i32
    %712 = vector.broadcast %c2_i32_196 : i32 to vector<1x8x256xi32>
    %713 = arith.cmpi sge, %708, %712 : vector<1x8x256xi32>
    %714 = arith.extui %713 : vector<1x8x256xi1> to vector<1x8x256xi32>
    %c9_i32_197 = arith.constant 9 : i32
    %715 = vector.broadcast %c9_i32_197 : i32 to vector<1x8x256xi32>
    %716 = arith.shli %714, %715 : vector<1x8x256xi32>
    %717 = arith.addi %711, %716 : vector<1x8x256xi32>
    %c3_i32_198 = arith.constant 3 : i32
    %718 = vector.broadcast %c3_i32_198 : i32 to vector<1x8x256xi32>
    %719 = arith.cmpi sge, %708, %718 : vector<1x8x256xi32>
    %720 = arith.extui %719 : vector<1x8x256xi1> to vector<1x8x256xi32>
    %c18_i32_199 = arith.constant 18 : i32
    %721 = vector.broadcast %c18_i32_199 : i32 to vector<1x8x256xi32>
    %722 = arith.shli %720, %721 : vector<1x8x256xi32>
    %723 = arith.addi %717, %722 : vector<1x8x256xi32>
    %c0_i32_200 = arith.constant 0 : i32
    %724 = vector.broadcast %c0_i32_200 : i32 to vector<1x8x256xi32>
    %725 = arith.select %704, %723, %724 : vector<1x8x256xi1>, vector<1x8x256xi32>
    %cst_201 = arith.constant dense<0> : vector<1x8xi32>
    %726 = vector.multi_reduction <add>, %725, %cst_201 [2] : vector<1x8x256xi32> to vector<1x8xi32>
    %727 = vector.shape_cast %726 : vector<1x8xi32> to vector<1x8x1xi32>
    %c511_i32_202 = arith.constant 511 : i32
    %728 = vector.broadcast %c511_i32_202 : i32 to vector<1x8x1xi32>
    %729 = arith.andi %727, %728 : vector<1x8x1xi32>
    %c9_i32_203 = arith.constant 9 : i32
    %730 = vector.broadcast %c9_i32_203 : i32 to vector<1x8x1xi32>
    %731 = arith.shrsi %727, %730 : vector<1x8x1xi32>
    %c511_i32_204 = arith.constant 511 : i32
    %732 = vector.broadcast %c511_i32_204 : i32 to vector<1x8x1xi32>
    %733 = arith.andi %731, %732 : vector<1x8x1xi32>
    %c18_i32_205 = arith.constant 18 : i32
    %734 = vector.broadcast %c18_i32_205 : i32 to vector<1x8x1xi32>
    %735 = arith.shrsi %727, %734 : vector<1x8x1xi32>
    %c511_i32_206 = arith.constant 511 : i32
    %736 = vector.broadcast %c511_i32_206 : i32 to vector<1x8x1xi32>
    %737 = arith.andi %735, %736 : vector<1x8x1xi32>
    %738 = arith.cmpi sge, %729, %697 : vector<1x8x1xi32>
    %739 = arith.cmpi sge, %733, %697 : vector<1x8x1xi32>
    %740 = arith.cmpi sge, %737, %697 : vector<1x8x1xi32>
    %741 = arith.extui %738 : vector<1x8x1xi1> to vector<1x8x1xi32>
    %742 = arith.extui %739 : vector<1x8x1xi1> to vector<1x8x1xi32>
    %743 = arith.addi %741, %742 : vector<1x8x1xi32>
    %744 = arith.extui %740 : vector<1x8x1xi1> to vector<1x8x1xi32>
    %745 = arith.addi %743, %744 : vector<1x8x1xi32>
    %746 = arith.select %738, %733, %729 : vector<1x8x1xi1>, vector<1x8x1xi32>
    %747 = arith.select %739, %737, %746 : vector<1x8x1xi1>, vector<1x8x1xi32>
    %c0_i32_207 = arith.constant 0 : i32
    %748 = vector.broadcast %c0_i32_207 : i32 to vector<1x8x1xi32>
    %749 = arith.select %740, %748, %747 : vector<1x8x1xi1>, vector<1x8x1xi32>
    %750 = arith.subi %697, %749 : vector<1x8x1xi32>
    %c4_i32_208 = arith.constant 4 : i32
    %751 = vector.broadcast %c4_i32_208 : i32 to vector<1x8x1xi32>
    %752 = arith.shli %745, %751 : vector<1x8x1xi32>
    %753 = arith.ori %700, %752 : vector<1x8x1xi32>
    %c-16_i32 = arith.constant -16 : i32
    %754 = vector.broadcast %c-16_i32 : i32 to vector<1x8x256xi32>
    %755 = arith.andi %9, %754 : vector<1x8x256xi32>
    %756 = vector.broadcast %753 : vector<1x8x1xi32> to vector<1x8x256xi32>
    %757 = arith.cmpi eq, %755, %756 : vector<1x8x256xi32>
    %c2_i32_209 = arith.constant 2 : i32
    %758 = vector.broadcast %c2_i32_209 : i32 to vector<1x8x256xi32>
    %759 = arith.shrsi %9, %758 : vector<1x8x256xi32>
    %c3_i32_210 = arith.constant 3 : i32
    %760 = vector.broadcast %c3_i32_210 : i32 to vector<1x8x256xi32>
    %761 = arith.andi %759, %760 : vector<1x8x256xi32>
    %c1_i32_211 = arith.constant 1 : i32
    %762 = vector.broadcast %c1_i32_211 : i32 to vector<1x8x256xi32>
    %763 = arith.cmpi sge, %761, %762 : vector<1x8x256xi32>
    %764 = arith.extui %763 : vector<1x8x256xi1> to vector<1x8x256xi32>
    %c2_i32_212 = arith.constant 2 : i32
    %765 = vector.broadcast %c2_i32_212 : i32 to vector<1x8x256xi32>
    %766 = arith.cmpi sge, %761, %765 : vector<1x8x256xi32>
    %767 = arith.extui %766 : vector<1x8x256xi1> to vector<1x8x256xi32>
    %c9_i32_213 = arith.constant 9 : i32
    %768 = vector.broadcast %c9_i32_213 : i32 to vector<1x8x256xi32>
    %769 = arith.shli %767, %768 : vector<1x8x256xi32>
    %770 = arith.addi %764, %769 : vector<1x8x256xi32>
    %c3_i32_214 = arith.constant 3 : i32
    %771 = vector.broadcast %c3_i32_214 : i32 to vector<1x8x256xi32>
    %772 = arith.cmpi sge, %761, %771 : vector<1x8x256xi32>
    %773 = arith.extui %772 : vector<1x8x256xi1> to vector<1x8x256xi32>
    %c18_i32_215 = arith.constant 18 : i32
    %774 = vector.broadcast %c18_i32_215 : i32 to vector<1x8x256xi32>
    %775 = arith.shli %773, %774 : vector<1x8x256xi32>
    %776 = arith.addi %770, %775 : vector<1x8x256xi32>
    %c0_i32_216 = arith.constant 0 : i32
    %777 = vector.broadcast %c0_i32_216 : i32 to vector<1x8x256xi32>
    %778 = arith.select %757, %776, %777 : vector<1x8x256xi1>, vector<1x8x256xi32>
    %cst_217 = arith.constant dense<0> : vector<1x8xi32>
    %779 = vector.multi_reduction <add>, %778, %cst_217 [2] : vector<1x8x256xi32> to vector<1x8xi32>
    %780 = vector.shape_cast %779 : vector<1x8xi32> to vector<1x8x1xi32>
    %c511_i32_218 = arith.constant 511 : i32
    %781 = vector.broadcast %c511_i32_218 : i32 to vector<1x8x1xi32>
    %782 = arith.andi %780, %781 : vector<1x8x1xi32>
    %c9_i32_219 = arith.constant 9 : i32
    %783 = vector.broadcast %c9_i32_219 : i32 to vector<1x8x1xi32>
    %784 = arith.shrsi %780, %783 : vector<1x8x1xi32>
    %c511_i32_220 = arith.constant 511 : i32
    %785 = vector.broadcast %c511_i32_220 : i32 to vector<1x8x1xi32>
    %786 = arith.andi %784, %785 : vector<1x8x1xi32>
    %c18_i32_221 = arith.constant 18 : i32
    %787 = vector.broadcast %c18_i32_221 : i32 to vector<1x8x1xi32>
    %788 = arith.shrsi %780, %787 : vector<1x8x1xi32>
    %c511_i32_222 = arith.constant 511 : i32
    %789 = vector.broadcast %c511_i32_222 : i32 to vector<1x8x1xi32>
    %790 = arith.andi %788, %789 : vector<1x8x1xi32>
    %791 = arith.cmpi sge, %782, %750 : vector<1x8x1xi32>
    %792 = arith.cmpi sge, %786, %750 : vector<1x8x1xi32>
    %793 = arith.cmpi sge, %790, %750 : vector<1x8x1xi32>
    %794 = arith.extui %791 : vector<1x8x1xi1> to vector<1x8x1xi32>
    %795 = arith.extui %792 : vector<1x8x1xi1> to vector<1x8x1xi32>
    %796 = arith.addi %794, %795 : vector<1x8x1xi32>
    %797 = arith.extui %793 : vector<1x8x1xi1> to vector<1x8x1xi32>
    %798 = arith.addi %796, %797 : vector<1x8x1xi32>
    %799 = arith.select %791, %786, %782 : vector<1x8x1xi1>, vector<1x8x1xi32>
    %800 = arith.select %792, %790, %799 : vector<1x8x1xi1>, vector<1x8x1xi32>
    %c0_i32_223 = arith.constant 0 : i32
    %801 = vector.broadcast %c0_i32_223 : i32 to vector<1x8x1xi32>
    %802 = arith.select %793, %801, %800 : vector<1x8x1xi1>, vector<1x8x1xi32>
    %803 = arith.subi %750, %802 : vector<1x8x1xi32>
    %c2_i32_224 = arith.constant 2 : i32
    %804 = vector.broadcast %c2_i32_224 : i32 to vector<1x8x1xi32>
    %805 = arith.shli %798, %804 : vector<1x8x1xi32>
    %806 = arith.ori %753, %805 : vector<1x8x1xi32>
    %c-4_i32 = arith.constant -4 : i32
    %807 = vector.broadcast %c-4_i32 : i32 to vector<1x8x256xi32>
    %808 = arith.andi %9, %807 : vector<1x8x256xi32>
    %809 = vector.broadcast %806 : vector<1x8x1xi32> to vector<1x8x256xi32>
    %810 = arith.cmpi eq, %808, %809 : vector<1x8x256xi32>
    %c0_i32_225 = arith.constant 0 : i32
    %811 = vector.broadcast %c0_i32_225 : i32 to vector<1x8x256xi32>
    %812 = arith.shrsi %9, %811 : vector<1x8x256xi32>
    %c3_i32_226 = arith.constant 3 : i32
    %813 = vector.broadcast %c3_i32_226 : i32 to vector<1x8x256xi32>
    %814 = arith.andi %812, %813 : vector<1x8x256xi32>
    %c1_i32_227 = arith.constant 1 : i32
    %815 = vector.broadcast %c1_i32_227 : i32 to vector<1x8x256xi32>
    %816 = arith.cmpi sge, %814, %815 : vector<1x8x256xi32>
    %817 = arith.extui %816 : vector<1x8x256xi1> to vector<1x8x256xi32>
    %c2_i32_228 = arith.constant 2 : i32
    %818 = vector.broadcast %c2_i32_228 : i32 to vector<1x8x256xi32>
    %819 = arith.cmpi sge, %814, %818 : vector<1x8x256xi32>
    %820 = arith.extui %819 : vector<1x8x256xi1> to vector<1x8x256xi32>
    %c9_i32_229 = arith.constant 9 : i32
    %821 = vector.broadcast %c9_i32_229 : i32 to vector<1x8x256xi32>
    %822 = arith.shli %820, %821 : vector<1x8x256xi32>
    %823 = arith.addi %817, %822 : vector<1x8x256xi32>
    %c3_i32_230 = arith.constant 3 : i32
    %824 = vector.broadcast %c3_i32_230 : i32 to vector<1x8x256xi32>
    %825 = arith.cmpi sge, %814, %824 : vector<1x8x256xi32>
    %826 = arith.extui %825 : vector<1x8x256xi1> to vector<1x8x256xi32>
    %c18_i32_231 = arith.constant 18 : i32
    %827 = vector.broadcast %c18_i32_231 : i32 to vector<1x8x256xi32>
    %828 = arith.shli %826, %827 : vector<1x8x256xi32>
    %829 = arith.addi %823, %828 : vector<1x8x256xi32>
    %c0_i32_232 = arith.constant 0 : i32
    %830 = vector.broadcast %c0_i32_232 : i32 to vector<1x8x256xi32>
    %831 = arith.select %810, %829, %830 : vector<1x8x256xi1>, vector<1x8x256xi32>
    %cst_233 = arith.constant dense<0> : vector<1x8xi32>
    %832 = vector.multi_reduction <add>, %831, %cst_233 [2] : vector<1x8x256xi32> to vector<1x8xi32>
    %833 = vector.shape_cast %832 : vector<1x8xi32> to vector<1x8x1xi32>
    %c511_i32_234 = arith.constant 511 : i32
    %834 = vector.broadcast %c511_i32_234 : i32 to vector<1x8x1xi32>
    %835 = arith.andi %833, %834 : vector<1x8x1xi32>
    %c9_i32_235 = arith.constant 9 : i32
    %836 = vector.broadcast %c9_i32_235 : i32 to vector<1x8x1xi32>
    %837 = arith.shrsi %833, %836 : vector<1x8x1xi32>
    %c511_i32_236 = arith.constant 511 : i32
    %838 = vector.broadcast %c511_i32_236 : i32 to vector<1x8x1xi32>
    %839 = arith.andi %837, %838 : vector<1x8x1xi32>
    %c18_i32_237 = arith.constant 18 : i32
    %840 = vector.broadcast %c18_i32_237 : i32 to vector<1x8x1xi32>
    %841 = arith.shrsi %833, %840 : vector<1x8x1xi32>
    %c511_i32_238 = arith.constant 511 : i32
    %842 = vector.broadcast %c511_i32_238 : i32 to vector<1x8x1xi32>
    %843 = arith.andi %841, %842 : vector<1x8x1xi32>
    %844 = arith.cmpi sge, %835, %803 : vector<1x8x1xi32>
    %845 = arith.cmpi sge, %839, %803 : vector<1x8x1xi32>
    %846 = arith.cmpi sge, %843, %803 : vector<1x8x1xi32>
    %847 = arith.extui %844 : vector<1x8x1xi1> to vector<1x8x1xi32>
    %848 = arith.extui %845 : vector<1x8x1xi1> to vector<1x8x1xi32>
    %849 = arith.addi %847, %848 : vector<1x8x1xi32>
    %850 = arith.extui %846 : vector<1x8x1xi1> to vector<1x8x1xi32>
    %851 = arith.addi %849, %850 : vector<1x8x1xi32>
    %c0_i32_239 = arith.constant 0 : i32
    %852 = vector.broadcast %c0_i32_239 : i32 to vector<1x8x1xi32>
    %853 = arith.shli %851, %852 : vector<1x8x1xi32>
    %854 = arith.ori %806, %853 : vector<1x8x1xi32>
    %c0_i32_240 = arith.constant 0 : i32
    %855 = vector.broadcast %c0_i32_240 : i32 to vector<1x8x1xi32>
    %856 = arith.cmpi slt, %854, %855 : vector<1x8x1xi32>
    %c-2147483648_i32_241 = arith.constant -2147483648 : i32
    %c-1_i32 = arith.constant -1 : i32
    %857 = vector.broadcast %c-2147483648_i32_241 : i32 to vector<1x8x1xi32>
    %858 = vector.broadcast %c-1_i32 : i32 to vector<1x8x1xi32>
    %859 = arith.select %856, %857, %858 : vector<1x8x1xi1>, vector<1x8x1xi32>
    %860 = arith.xori %854, %859 : vector<1x8x1xi32>
    %861 = tpu.bitcast %860 : vector<1x8x1xi32> -> vector<1x8x1xf32>
    %c0_242 = arith.constant 0 : index
    %c0_243 = arith.constant 0 : index
    %862 = vector.load %arg3[%c0_242, %c0_243] : memref<8x128xf32, #tpu.memory_space<vmem>>, vector<8x128xf32>
    %c0_244 = arith.constant 0 : index
    %c0_245 = arith.constant 0 : index
    %c0_246 = arith.constant 0 : index
    %863 = vector.load %arg6[%c0_244, %c0_245, %c0_246] : memref<1x1x128xf32, #tpu.memory_space<vmem>>, vector<1x1x128xf32>
    %864 = vector.extract_strided_slice %861 {offsets = [0, 0, 0], sizes = [1, 1, 1], strides = [1, 1, 1]} : vector<1x8x1xf32> to vector<1x1x1xf32>
    %865 = vector.extract_strided_slice %862 {offsets = [0, 0], sizes = [1, 128], strides = [1, 1]} : vector<8x128xf32> to vector<1x128xf32>
    %866 = vector.shape_cast %865 : vector<1x128xf32> to vector<1x1x128xf32>
    %867 = vector.broadcast %864 : vector<1x1x1xf32> to vector<1x1x128xf32>
    %868 = arith.mulf %867, %866 : vector<1x1x128xf32>
    %869 = arith.addf %863, %868 : vector<1x1x128xf32>
    %870 = vector.extract_strided_slice %861 {offsets = [0, 1, 0], sizes = [1, 1, 1], strides = [1, 1, 1]} : vector<1x8x1xf32> to vector<1x1x1xf32>
    %871 = vector.extract_strided_slice %862 {offsets = [1, 0], sizes = [1, 128], strides = [1, 1]} : vector<8x128xf32> to vector<1x128xf32>
    %872 = vector.shape_cast %871 : vector<1x128xf32> to vector<1x1x128xf32>
    %873 = vector.broadcast %870 : vector<1x1x1xf32> to vector<1x1x128xf32>
    %874 = arith.mulf %873, %872 : vector<1x1x128xf32>
    %875 = arith.addf %869, %874 : vector<1x1x128xf32>
    %876 = vector.extract_strided_slice %861 {offsets = [0, 2, 0], sizes = [1, 1, 1], strides = [1, 1, 1]} : vector<1x8x1xf32> to vector<1x1x1xf32>
    %877 = vector.extract_strided_slice %862 {offsets = [2, 0], sizes = [1, 128], strides = [1, 1]} : vector<8x128xf32> to vector<1x128xf32>
    %878 = vector.shape_cast %877 : vector<1x128xf32> to vector<1x1x128xf32>
    %879 = vector.broadcast %876 : vector<1x1x1xf32> to vector<1x1x128xf32>
    %880 = arith.mulf %879, %878 : vector<1x1x128xf32>
    %881 = arith.addf %875, %880 : vector<1x1x128xf32>
    %882 = vector.extract_strided_slice %861 {offsets = [0, 3, 0], sizes = [1, 1, 1], strides = [1, 1, 1]} : vector<1x8x1xf32> to vector<1x1x1xf32>
    %883 = vector.extract_strided_slice %862 {offsets = [3, 0], sizes = [1, 128], strides = [1, 1]} : vector<8x128xf32> to vector<1x128xf32>
    %884 = vector.shape_cast %883 : vector<1x128xf32> to vector<1x1x128xf32>
    %885 = vector.broadcast %882 : vector<1x1x1xf32> to vector<1x1x128xf32>
    %886 = arith.mulf %885, %884 : vector<1x1x128xf32>
    %887 = arith.addf %881, %886 : vector<1x1x128xf32>
    %888 = vector.extract_strided_slice %861 {offsets = [0, 4, 0], sizes = [1, 1, 1], strides = [1, 1, 1]} : vector<1x8x1xf32> to vector<1x1x1xf32>
    %889 = vector.extract_strided_slice %862 {offsets = [4, 0], sizes = [1, 128], strides = [1, 1]} : vector<8x128xf32> to vector<1x128xf32>
    %890 = vector.shape_cast %889 : vector<1x128xf32> to vector<1x1x128xf32>
    %891 = vector.broadcast %888 : vector<1x1x1xf32> to vector<1x1x128xf32>
    %892 = arith.mulf %891, %890 : vector<1x1x128xf32>
    %893 = arith.addf %887, %892 : vector<1x1x128xf32>
    %894 = vector.extract_strided_slice %861 {offsets = [0, 5, 0], sizes = [1, 1, 1], strides = [1, 1, 1]} : vector<1x8x1xf32> to vector<1x1x1xf32>
    %895 = vector.extract_strided_slice %862 {offsets = [5, 0], sizes = [1, 128], strides = [1, 1]} : vector<8x128xf32> to vector<1x128xf32>
    %896 = vector.shape_cast %895 : vector<1x128xf32> to vector<1x1x128xf32>
    %897 = vector.broadcast %894 : vector<1x1x1xf32> to vector<1x1x128xf32>
    %898 = arith.mulf %897, %896 : vector<1x1x128xf32>
    %899 = arith.addf %893, %898 : vector<1x1x128xf32>
    %900 = vector.extract_strided_slice %861 {offsets = [0, 6, 0], sizes = [1, 1, 1], strides = [1, 1, 1]} : vector<1x8x1xf32> to vector<1x1x1xf32>
    %901 = vector.extract_strided_slice %862 {offsets = [6, 0], sizes = [1, 128], strides = [1, 1]} : vector<8x128xf32> to vector<1x128xf32>
    %902 = vector.shape_cast %901 : vector<1x128xf32> to vector<1x1x128xf32>
    %903 = vector.broadcast %900 : vector<1x1x1xf32> to vector<1x1x128xf32>
    %904 = arith.mulf %903, %902 : vector<1x1x128xf32>
    %905 = arith.addf %899, %904 : vector<1x1x128xf32>
    %906 = vector.extract_strided_slice %861 {offsets = [0, 7, 0], sizes = [1, 1, 1], strides = [1, 1, 1]} : vector<1x8x1xf32> to vector<1x1x1xf32>
    %907 = vector.extract_strided_slice %862 {offsets = [7, 0], sizes = [1, 128], strides = [1, 1]} : vector<8x128xf32> to vector<1x128xf32>
    %908 = vector.shape_cast %907 : vector<1x128xf32> to vector<1x1x128xf32>
    %909 = vector.broadcast %906 : vector<1x1x1xf32> to vector<1x1x128xf32>
    %910 = arith.mulf %909, %908 : vector<1x1x128xf32>
    %911 = arith.addf %905, %910 : vector<1x1x128xf32>
    %c0_247 = arith.constant 0 : index
    %c0_248 = arith.constant 0 : index
    %c0_249 = arith.constant 0 : index
    %912 = vector.load %arg6[%c0_247, %c0_248, %c0_249] : memref<1x1x128xf32, #tpu.memory_space<vmem>>, vector<1x1x128xf32>
    tpu.vector_store %arg6[%c0_247, %c0_248, %c0_249], %911 {strides = array<i32>} : memref<1x1x128xf32, #tpu.memory_space<vmem>>, vector<1x1x128xf32>,
    %c0_i32_250 = arith.constant 0 : i32
    %913 = arith.cmpi eq, %arg1, %c0_i32_250 : i32
    %914 = arith.extui %913 : i1 to i32
    %c0_i32_251 = arith.constant 0 : i32
    %915 = arith.cmpi ne, %914, %c0_i32_251 : i32
    scf.if %915 {
      %c0_252 = arith.constant 0 : index
      %c0_253 = arith.constant 0 : index
      %c0_254 = arith.constant 0 : index
      %916 = vector.load %arg6[%c0_252, %c0_253, %c0_254] : memref<1x1x128xf32, #tpu.memory_space<vmem>>, vector<1x1x128xf32>
      %c0_255 = arith.constant 0 : index
      %c0_256 = arith.constant 0 : index
      %c0_257 = arith.constant 0 : index
      %917 = vector.load %arg5[%c0_255, %c0_256, %c0_257] : memref<1x1x128xf32, #tpu.memory_space<vmem>>, vector<1x1x128xf32>
      tpu.vector_store %arg5[%c0_255, %c0_256, %c0_257], %916 {strides = array<i32>} : memref<1x1x128xf32, #tpu.memory_space<vmem>>, vector<1x1x128xf32>,
    } else {
    }
    return
  }
  func.func @transform_0(%arg0: i32, %arg1: i32) -> (i32, i32, i32) {
    %c0_i32 = arith.constant 0 : i32
    %c0_i32_0 = arith.constant 0 : i32
    return %arg0, %arg1, %c0_i32 : i32, i32, i32
  }
  func.func @transform_1(%arg0: i32, %arg1: i32) -> (i32, i32) {
    %c0_i32 = arith.constant 0 : i32
    %c0_i32_0 = arith.constant 0 : i32
    return %arg1, %c0_i32 : i32, i32
  }
  func.func @transform_2(%arg0: i32, %arg1: i32) -> (i32, i32) {
    %c0_i32 = arith.constant 0 : i32
    %c0_i32_0 = arith.constant 0 : i32
    %c0_i32_1 = arith.constant 0 : i32
    return %c0_i32, %c0_i32_0 : i32, i32
  }
  func.func @transform_3(%arg0: i32, %arg1: i32) -> (i32, i32, i32) {
    %c0_i32 = arith.constant 0 : i32
    %c0_i32_0 = arith.constant 0 : i32
    %c0_i32_1 = arith.constant 0 : i32
    return %arg0, %c0_i32, %c0_i32_0 : i32, i32, i32
  }
}

</mosaic_0001>

<llo_original>
// kernel: tpu_custom_call.1
$region0: #{tpu_custom_call.1}
  #allocation0 [shape = 'u32[]', space=smem, size = 0x4, offset = 0x4, fixed_abs, tag = 'smem constant byte address 0x4 - core index']
  #allocation1 [shape = 'u32[144,128]{1,0:T(1,128)}', space=vmem, size = 0x12000, scoped, tag = 'internal scratch']
  #allocation2 [shape = 'f32[1,1,128]{2,1,0:T(1,128)}', space=vmem, size = 0x200, scoped, tag = 'scratch operand']
  %s0 = inlined_call_operand.hbm [shape: f32[2,8,256], index: 0, kind: input, shape index: {}]
  %s1 = inlined_call_operand.hbm [shape: f32[8,128], index: 1, kind: input, shape index: {}]
  %s2 = inlined_call_operand.vmem [shape: f32[1,128], index: 2, kind: input, shape index: {}]
  %s3 = inlined_call_operand.hbm [shape: f32[2,1,128], index: 3, kind: output, shape index: {}]
  %s4 = sld [smem:[#allocation0]]
  $region61: #{tpu_custom_call.1} parent=0
    _
  %s6 = ssub.s32 1, %s4
  %s7 = scalar_select 0, %s6, %s4
  $region1: #{tpu_custom_call.1} parent=0
    #allocation3 [shape = 'u8[16384]{0}', space=vmem, size = 0x4000, scoped, tag = 'input window, operand 0']
    #allocation4 [shape = 's32[2]{0}', space=sflag, size = 0x8, scoped, tag = 'scoped memory for tpu_custom_call.1']
    #allocation5 [shape = 's32[2]{0}', space=sflag, size = 0x8, scoped, tag = 'scoped memory for tpu_custom_call.1']
    #allocation6 [shape = 'u8[4096]{0}', space=vmem, size = 0x1000, scoped, tag = 'input window, operand 1, single buffered']
    #allocation7 [shape = 's32[1]{0}', space=sflag, size = 0x4, scoped, tag = 'scoped memory for tpu_custom_call.1']
    #allocation8 [shape = 'u8[1024]{0}', space=vmem, size = 0x400, scoped, tag = 'output window, operand 0']
    %8 = vsyncpa [#allocation4], 0
    %s9 = scalar_lea.sflag [#allocation4], 1
    %10 = vsyncpa %s9, 0
    %11 = vsyncpa [#allocation7], 0
    %12 = vsyncpa [#allocation5], 0
    %s13 = scalar_lea.sflag [#allocation5], 1
    %14 = vsyncpa %s13, 0
    loop: start=0, step=1, limit=4
    $region2: #{tpu_custom_call.1} parent=1 // loop_pre_header
      _
    $region3: #{tpu_custom_call.1} parent=1 // loop_header
      %s16 = sphi 0, %s20
      %p17 = scmp.ge.s32.totalorder %s16, 4
      %s23 = sphi 0, %s35
      %s24 = sphi 0, %s31
      %s25 = sphi 0, %s23
      %s26 = sphi 0, %s24
      %s27 = sphi 0, %s25
      %s28 = sphi 0, %s26
      %s40 = sphi 0, %s42
      %s43 = sphi 0, %s40
      %s44 = sphi 0, %s43
      %s60 = sphi 0, %s44
      %s66 = sphi 0, %s68
      %s69 = sphi 0, %s66
      %s70 = sphi 0, %s69
      %s86 = sphi 0, %s70
      %s90 = sphi 0, %s90
      %s92 = sphi 0, %s90
      %s93 = sphi 0, %s92
      %s107 = sphi 0, %s93
      %s113 = sphi 0, %s115
      %s116 = sphi 0, %s113
      %s117 = sphi 0, %s116
      %s133 = sphi 0, %s117
    $region4: #{tpu_custom_call.1} parent=1 // loop_header_branch
      %19 = sbr.rel (%p17) target = $region8
    $region5: #{tpu_custom_call.1} parent=1 // loop_body
      %s21 = ssub.s32 %s16, 1
      %s22 = ssub.s32 %s16, 2
      %s29 = sadd.s32 1, %s24
      %p30 = scmp.ge.s32.totalorder %s29, 1
      %s31 = scalar_select %p30, 0, %s29
      %s32 = sadd.s32 1, %s23
      %s33 = scalar_select %p30, %s32, %s23
      %p34 = scmp.ge.s32.totalorder %s33, 2
      %s35 = scalar_select %p34, 0, %s33
      %s36 = ssub.s32 %s23, %s35
      %s37 = ssub.s32 %s24, %s31
      %s38 = sor.u32 %s36, %s37
      %p39 = scmp.eq.s32.totalorder %s38, 0
      %s41 = sadd.s32 %s40, 1
      %s42 = scalar_select %p39, %s40, %s41
      %p45 = pneg %p39
      %p46 = scmp.eq.s32.totalorder %s16, 1
      %p47 = por %p45, %p46
      %p48 = scmp.ne.s32.totalorder %s40, %s43
      %p49 = scmp.eq.s32.totalorder %s16, 0
      %p50 = por %p48, %p49
      %p51 = scmp.ne.s32.totalorder %s40, %s43
      %p52 = scmp.eq.s32.totalorder %s21, 1
      %p53 = por %p51, %p52
      %p54 = scmp.ne.s32.totalorder %s43, %s44
      %p55 = scmp.eq.s32.totalorder %s21, 0
      %p56 = por %p54, %p55
      %p57 = scmp.ne.s32.totalorder %s43, %s44
      %p58 = scmp.eq.s32.totalorder %s22, 1
      %p59 = por %p57, %p58
      %p61 = scmp.ne.s32.totalorder %s44, %s60
      %p62 = scmp.eq.s32.totalorder %s22, 0
      %p63 = por %p61, %p62
      %s64 = ssub.s32 %s24, %s31
      %p65 = scmp.eq.s32.totalorder %s64, 0
      %s67 = sadd.s32 %s66, 1
      %s68 = scalar_select %p65, %s66, %s67
      %p71 = pneg %p65
      %p72 = scmp.eq.s32.totalorder %s16, 1
      %p73 = por %p71, %p72
      %p74 = scmp.ne.s32.totalorder %s66, %s69
      %p75 = scmp.eq.s32.totalorder %s16, 0
      %p76 = por %p74, %p75
      %p77 = scmp.ne.s32.totalorder %s66, %s69
      %p78 = scmp.eq.s32.totalorder %s21, 1
      %p79 = por %p77, %p78
      %p80 = scmp.ne.s32.totalorder %s69, %s70
      %p81 = scmp.eq.s32.totalorder %s21, 0
      %p82 = por %p80, %p81
      %p83 = scmp.ne.s32.totalorder %s69, %s70
      %p84 = scmp.eq.s32.totalorder %s22, 1
      %p85 = por %p83, %p84
      %p87 = scmp.ne.s32.totalorder %s70, %s86
      %p88 = scmp.eq.s32.totalorder %s22, 0
      %p89 = por %p87, %p88
      %s91 = sadd.s32 %s90, 1
      %p94 = scmp.eq.s32.totalorder %s16, 1
      %p95 = scmp.ne.s32.totalorder %s90, %s92
      %p96 = scmp.eq.s32.totalorder %s16, 0
      %p97 = por %p95, %p96
      %p98 = scmp.ne.s32.totalorder %s90, %s92
      %p99 = scmp.eq.s32.totalorder %s21, 1
      %p100 = por %p98, %p99
      %p101 = scmp.ne.s32.totalorder %s92, %s93
      %p102 = scmp.eq.s32.totalorder %s21, 0
      %p103 = por %p101, %p102
      %p104 = scmp.ne.s32.totalorder %s92, %s93
      %p105 = scmp.eq.s32.totalorder %s22, 1
      %p106 = por %p104, %p105
      %p108 = scmp.ne.s32.totalorder %s93, %s107
      %p109 = scmp.eq.s32.totalorder %s22, 0
      %p110 = por %p108, %p109
      %s111 = ssub.s32 %s23, %s35
      %p112 = scmp.eq.s32.totalorder %s111, 0
      %s114 = sadd.s32 %s113, 1
      %s115 = scalar_select %p112, %s113, %s114
      %p118 = pneg %p112
      %p119 = scmp.eq.s32.totalorder %s16, 1
      %p120 = por %p118, %p119
      %p121 = scmp.ne.s32.totalorder %s113, %s116
      %p122 = scmp.eq.s32.totalorder %s16, 0
      %p123 = por %p121, %p122
      %p124 = scmp.ne.s32.totalorder %s113, %s116
      %p125 = scmp.eq.s32.totalorder %s21, 1
      %p126 = por %p124, %p125
      %p127 = scmp.ne.s32.totalorder %s116, %s117
      %p128 = scmp.eq.s32.totalorder %s21, 0
      %p129 = por %p127, %p128
      %p130 = scmp.ne.s32.totalorder %s116, %s117
      %p131 = scmp.eq.s32.totalorder %s22, 1
      %p132 = por %p130, %p131
      %p134 = scmp.ne.s32.totalorder %s117, %s133
      %p135 = scmp.eq.s32.totalorder %s22, 0
      %p136 = por %p134, %p135
      %p137 = scmp.le.s32.totalorder 1, %s16
      %p138 = scmp.lt.s32.totalorder %s16, 3
      %p139 = pnand %p137, %p138
      %p140 = pneg %p139
      // Predicated region
      $region9: #{tpu_custom_call.1} parent=5 // pred_check
        _
      $region10: #{tpu_custom_call.1} parent=5 // pred_check_branch
        %142 = sbr.rel (%p139) target = $region12
      $region11: #{tpu_custom_call.1} parent=5 // pred_region
        %s143 = ssub.s32 %s16, 1
        // Predicated region
        $region13: #{tpu_custom_call.1} parent=11 // pred_check
          %p144 = pneg %p82
        $region14: #{tpu_custom_call.1} parent=11 // pred_check_branch
          %146 = sbr.rel (%p144) target = $region16
        $region15: #{tpu_custom_call.1} parent=11 // pred_region
          %s148 = ssub.s32 128, 128
          %149 = vsyncadd [#allocation7], %s148
          %s150 = smul.addr %s26, 128
          %s151 = scalar_lea.hbm %s1, %s150
          %s153 = sshll.u32 [#allocation6], 4
          %s154 = int_to_ptr.vmem [resolvable:$true] %s153
          %156 = dma.hbm_to_vmem [thread:$0]  %s151, 128, %s154, [#allocation7]
        $region16: #{tpu_custom_call.1} parent=11 // pred_fallthru
          _
        // Predicated region
        $region17: #{tpu_custom_call.1} parent=11 // pred_check
          %p157 = pneg %p103
        $region18: #{tpu_custom_call.1} parent=11 // pred_check_branch
          %159 = sbr.rel (%p157) target = $region20
        $region19: #{tpu_custom_call.1} parent=11 // pred_region
          _
        $region20: #{tpu_custom_call.1} parent=11 // pred_fallthru
          _
      $region12: #{tpu_custom_call.1} parent=5 // pred_fallthru
        _
      %p160 = scmp.lt.s32.totalorder %s16, 2
      // Predicated region
      $region21: #{tpu_custom_call.1} parent=5 // pred_check
        %p161 = pneg %p160
      $region22: #{tpu_custom_call.1} parent=5 // pred_check_branch
        %163 = sbr.rel (%p161) target = $region24
      $region23: #{tpu_custom_call.1} parent=5 // pred_region
        // Predicated region
        $region25: #{tpu_custom_call.1} parent=23 // pred_check
          %p164 = pneg %p50
        $region26: #{tpu_custom_call.1} parent=23 // pred_check_branch
          %166 = sbr.rel (%p164) target = $region28
        $region27: #{tpu_custom_call.1} parent=23 // pred_region
          %s167 = sand.u32 %s40, 1
          %s168 = scalar_lea.sflag [#allocation4], %s167
          %s169 = sand.u32 %s40, 1
          %s170 = smul.addr %s169, 16
          %s171 = scalar_lea.vmem [#allocation3], %s170
          %s173 = ssub.s32 256, 256
          %174 = vsyncadd %s168, %s173
          %s175 = smul.addr %s24, 2
          %s176 = smul.addr %s23, 2
          %s177 = sadd.s32 %s175, %s176
          %s178 = smul.addr %s177, 128
          %s179 = scalar_lea.hbm %s0, %s178
          %s181 = sshll.u32 %s171, 4
          %s182 = int_to_ptr.vmem [resolvable:$true] %s181
          %184 = dma.hbm_to_vmem [thread:$0]  %s179, 256, %s182, %s168
        $region28: #{tpu_custom_call.1} parent=23 // pred_fallthru
          _
      $region24: #{tpu_custom_call.1} parent=5 // pred_fallthru
        _
      %p185 = scmp.le.s32.totalorder 1, %s16
      %p186 = scmp.lt.s32.totalorder %s16, 3
      %p187 = pnand %p185, %p186
      %p188 = pneg %p187
      // Predicated region
      $region29: #{tpu_custom_call.1} parent=5 // pred_check
        _
      $region30: #{tpu_custom_call.1} parent=5 // pred_check_branch
        %190 = sbr.rel (%p187) target = $region32
      $region31: #{tpu_custom_call.1} parent=5 // pred_region
        %s191 = ssub.s32 %s16, 1
        %s192 = sand.u32 %s43, 1
        %s193 = scalar_lea.sflag [#allocation4], %s192
        %s194 = sand.u32 %s43, 1
        %s195 = smul.addr %s194, 16
        %s196 = scalar_lea.vmem [#allocation3], %s195
        // Predicated region
        $region33: #{tpu_custom_call.1} parent=31 // pred_check
          %p197 = pneg %p56
        $region34: #{tpu_custom_call.1} parent=31 // pred_check_branch
          %199 = sbr.rel (%p197) target = $region36
        $region35: #{tpu_custom_call.1} parent=31 // pred_region
          %200 = dma.done %s193, 256
        $region36: #{tpu_custom_call.1} parent=31 // pred_fallthru
          _
        // Predicated region
        $region37: #{tpu_custom_call.1} parent=31 // pred_check
          %p201 = pneg %p82
        $region38: #{tpu_custom_call.1} parent=31 // pred_check_branch
          %203 = sbr.rel (%p201) target = $region40
        $region39: #{tpu_custom_call.1} parent=31 // pred_region
          %204 = dma.done [#allocation7], 128
        $region40: #{tpu_custom_call.1} parent=31 // pred_fallthru
          _
        %s205 = sand.u32 %s43, 1
        %s206 = scalar_lea.sflag [#allocation4], %s205
        %s207 = sand.u32 %s43, 1
        %s208 = smul.addr %s207, 16
        %s209 = scalar_lea.vmem [#allocation3], %s208
        %p210 = pneg %p56
        %p211 = pneg %p53
        %p212 = pneg %p82
        %p213 = pneg %p79
        %p214 = pneg %p103
        %p215 = pneg %p100
        %p216 = pneg %p129
        %p217 = pneg %p126
        %s218 = sand.u32 %s116, 1
        %s219 = scalar_lea.sflag [#allocation5], %s218
        %s220 = sand.u32 %s116, 1
        %s221 = scalar_lea.vmem [#allocation8], %s220
        %p222 = scmp.eq.s32.totalorder %s26, 0
        // Predicated region
        $region41: #{tpu_custom_call.1} parent=31 // pred_check
          %p223 = pneg %p222
        $region42: #{tpu_custom_call.1} parent=31 // pred_check_branch
          %225 = sbr.rel (%p223) target = $region44
        $region43: #{tpu_custom_call.1} parent=31 // pred_region
          %v226 = vld [vmem:[%s2] sm:$0x1]
          %227 = vst [vmem:[#allocation2] sm:$0x1] %v226
        $region44: #{tpu_custom_call.1} parent=31 // pred_fallthru
          _
        %v228 = vld [vmem:[%s196] sm:$0xff]
        %v229 = vld [vmem:[%s196 + $0x8] sm:$0xff]
        %v232 = vshra.s32 %v228, 31
        %v233 = vshra.s32 %v229, 31
        %v234 = vor.u32 %v232, 2147483648
        %v235 = vor.u32 %v233, 2147483648
        %v236 = vxor.u32 %v228, %v234
        %v237 = vxor.u32 %v229, %v235
        %v238 = vshra.s32 %v236, 30
        %v239 = vshra.s32 %v237, 30
        %v240 = vand.u32 %v238, 3
        %v241 = vand.u32 %v239, 3
        %vm242 = vcmp.ge.s32.totalorder %v240, 1
        %vm243 = vcmp.ge.s32.totalorder %v241, 1
        %v244 = vsel %vm242, 1, 0
        %v245 = vsel %vm243, 1, 0
        %vm246 = vcmp.ge.s32.totalorder %v240, 2
        %vm247 = vcmp.ge.s32.totalorder %v241, 2
        %v248 = vsel %vm246, 1, 0
        %v249 = vsel %vm247, 1, 0
        %v250 = vshll.u32 %v248, 9
        %v251 = vshll.u32 %v249, 9
        %v252 = vadd.s32 %v244, %v250
        %v253 = vadd.s32 %v245, %v251
        %vm254 = vcmp.ge.s32.totalorder %v240, 3
        %vm255 = vcmp.ge.s32.totalorder %v241, 3
        %v256 = vsel %vm254, 1, 0
        %v257 = vsel %vm255, 1, 0
        %v258 = vshll.u32 %v256, 18
        %v259 = vshll.u32 %v257, 18
        %v260 = vadd.s32 %v252, %v258
        %v261 = vadd.s32 %v253, %v259
        %v262 = vadd.s32 %v260, %v261
        %v263 = vand.u32 %v262, 65535
        %v264 = vshrl.u32 %v262, 16
        %v265 = vcvt.s32.f32 %v263
        %v266 = vcvt.s32.f32 %v264
        %267 = vadd.xlane.f32.xlu0 %v265
        %v268 = vpop.xlane.xlu0 %267
        %269 = vadd.xlane.f32.xlu0 %v266
        %v270 = vpop.xlane.xlu0 %269
        %v271 = vcvt.f32.s32 %v268
        %v272 = vcvt.f32.s32 %v270
        %v273 = vshll.u32 %v272, 16
        %v274 = vadd.s32 %v273, %v271
        %v275 = vand.u32 %v274, 511
        %v276 = vshra.s32 %v274, 9
        %v277 = vand.u32 %v276, 511
        %v278 = vshra.s32 %v274, 18
        %v279 = vand.u32 %v278, 511
        %vm280 = vcmp.ge.s32.totalorder %v275, 128
        %vm281 = vcmp.ge.s32.totalorder %v277, 128
        %vm282 = vcmp.ge.s32.totalorder %v279, 128
        %v283 = vsel %vm280, 1, 0
        %v284 = vsel %vm281, 1, 0
        %v285 = vadd.s32 %v283, %v284
        %v286 = vsel %vm282, 1, 0
        %v287 = vadd.s32 %v285, %v286
        %v288 = vsel %vm280, %v277, %v275
        %v289 = vsel %vm281, %v279, %v288
        %v290 = vsel %vm282, 0, %v289
        %v291 = vsub.s32 128, %v290
        %v292 = vshll.u32 %v287, 30
        %v293 = vand.u32 %v236, 3221225472
        %v294 = vand.u32 %v237, 3221225472
        %vm295 = vcmp.eq.s32.totalorder %v293, %v292
        %vm296 = vcmp.eq.s32.totalorder %v294, %v292
        %v297 = vshra.s32 %v236, 28
        %v298 = vshra.s32 %v237, 28
        %v299 = vand.u32 %v297, 3
        %v300 = vand.u32 %v298, 3
        %vm301 = vcmp.ge.s32.totalorder %v299, 1
        %vm302 = vcmp.ge.s32.totalorder %v300, 1
        %v303 = vsel %vm301, 1, 0
        %v304 = vsel %vm302, 1, 0
        %vm305 = vcmp.ge.s32.totalorder %v299, 2
        %vm306 = vcmp.ge.s32.totalorder %v300, 2
        %v307 = vsel %vm305, 1, 0
        %v308 = vsel %vm306, 1, 0
        %v309 = vshll.u32 %v307, 9
        %v310 = vshll.u32 %v308, 9
        %v311 = vadd.s32 %v303, %v309
        %v312 = vadd.s32 %v304, %v310
        %vm313 = vcmp.ge.s32.totalorder %v299, 3
        %vm314 = vcmp.ge.s32.totalorder %v300, 3
        %v315 = vsel %vm313, 1, 0
        %v316 = vsel %vm314, 1, 0
        %v317 = vshll.u32 %v315, 18
        %v318 = vshll.u32 %v316, 18
        %v319 = vadd.s32 %v311, %v317
        %v320 = vadd.s32 %v312, %v318
        %v321 = vsel %vm295, %v319, 0
        %v322 = vsel %vm296, %v320, 0
        %v323 = vadd.s32 %v321, %v322
        %v324 = vand.u32 %v323, 65535
        %v325 = vshrl.u32 %v323, 16
        %v326 = vcvt.s32.f32 %v324
        %v327 = vcvt.s32.f32 %v325
        %328 = vadd.xlane.f32.xlu0 %v326
        %v329 = vpop.xlane.xlu0 %328
        %330 = vadd.xlane.f32.xlu0 %v327
        %v331 = vpop.xlane.xlu0 %330
        %v332 = vcvt.f32.s32 %v329
        %v333 = vcvt.f32.s32 %v331
        %v334 = vshll.u32 %v333, 16
        %v335 = vadd.s32 %v334, %v332
        %v336 = vand.u32 %v335, 511
        %v337 = vshra.s32 %v335, 9
        %v338 = vand.u32 %v337, 511
        %v339 = vshra.s32 %v335, 18
        %v340 = vand.u32 %v339, 511
        %vm341 = vcmp.ge.s32.totalorder %v336, %v291
        %vm342 = vcmp.ge.s32.totalorder %v338, %v291
        %vm343 = vcmp.ge.s32.totalorder %v340, %v291
        %v344 = vsel %vm341, 1, 0
        %v345 = vsel %vm342, 1, 0
        %v346 = vadd.s32 %v344, %v345
        %v347 = vsel %vm343, 1, 0
        %v348 = vadd.s32 %v346, %v347
        %v349 = vsel %vm341, %v338, %v336
        %v350 = vsel %vm342, %v340, %v349
        %v351 = vsel %vm343, 0, %v350
        %v352 = vsub.s32 %v291, %v351
        %v353 = vshll.u32 %v348, 28
        %v354 = vor.u32 %v292, %v353
        %v355 = vand.u32 %v236, 4026531840
        %v356 = vand.u32 %v237, 4026531840
        %vm357 = vcmp.eq.s32.totalorder %v355, %v354
        %vm358 = vcmp.eq.s32.totalorder %v356, %v354
        %v359 = vshra.s32 %v236, 26
        %v360 = vshra.s32 %v237, 26
        %v361 = vand.u32 %v359, 3
        %v362 = vand.u32 %v360, 3
        %vm363 = vcmp.ge.s32.totalorder %v361, 1
        %vm364 = vcmp.ge.s32.totalorder %v362, 1
        %v365 = vsel %vm363, 1, 0
        %v366 = vsel %vm364, 1, 0
        %vm367 = vcmp.ge.s32.totalorder %v361, 2
        %vm368 = vcmp.ge.s32.totalorder %v362, 2
        %v369 = vsel %vm367, 1, 0
        %v370 = vsel %vm368, 1, 0
        %v371 = vshll.u32 %v369, 9
        %v372 = vshll.u32 %v370, 9
        %v373 = vadd.s32 %v365, %v371
        %v374 = vadd.s32 %v366, %v372
        %vm375 = vcmp.ge.s32.totalorder %v361, 3
        %vm376 = vcmp.ge.s32.totalorder %v362, 3
        %v377 = vsel %vm375, 1, 0
        %v378 = vsel %vm376, 1, 0
        %v379 = vshll.u32 %v377, 18
        %v380 = vshll.u32 %v378, 18
        %v381 = vadd.s32 %v373, %v379
        %v382 = vadd.s32 %v374, %v380
        %v383 = vsel %vm357, %v381, 0
        %v384 = vsel %vm358, %v382, 0
        %v385 = vadd.s32 %v383, %v384
        %v386 = vand.u32 %v385, 65535
        %v387 = vshrl.u32 %v385, 16
        %v388 = vcvt.s32.f32 %v386
        %v389 = vcvt.s32.f32 %v387
        %390 = vadd.xlane.f32.xlu0 %v388
        %v391 = vpop.xlane.xlu0 %390
        %392 = vadd.xlane.f32.xlu0 %v389
        %v393 = vpop.xlane.xlu0 %392
        %v394 = vcvt.f32.s32 %v391
        %v395 = vcvt.f32.s32 %v393
        %v396 = vshll.u32 %v395, 16
        %v397 = vadd.s32 %v396, %v394
        %v398 = vand.u32 %v397, 511
        %v399 = vshra.s32 %v397, 9
        %v400 = vand.u32 %v399, 511
        %v401 = vshra.s32 %v397, 18
        %v402 = vand.u32 %v401, 511
        %vm403 = vcmp.ge.s32.totalorder %v398, %v352
        %vm404 = vcmp.ge.s32.totalorder %v400, %v352
        %vm405 = vcmp.ge.s32.totalorder %v402, %v352
        %v406 = vsel %vm403, 1, 0
        %v407 = vsel %vm404, 1, 0
        %v408 = vadd.s32 %v406, %v407
        %v409 = vsel %vm405, 1, 0
        %v410 = vadd.s32 %v408, %v409
        %v411 = vsel %vm403, %v400, %v398
        %v412 = vsel %vm404, %v402, %v411
        %v413 = vsel %vm405, 0, %v412
        %v414 = vsub.s32 %v352, %v413
        %v415 = vshll.u32 %v410, 26
        %v416 = vor.u32 %v354, %v415
        %v417 = vand.u32 %v236, 4227858432
        %v418 = vand.u32 %v237, 4227858432
        %vm419 = vcmp.eq.s32.totalorder %v417, %v416
        %vm420 = vcmp.eq.s32.totalorder %v418, %v416
        %v421 = vshra.s32 %v236, 24
        %v422 = vshra.s32 %v237, 24
        %v423 = vand.u32 %v421, 3
        %v424 = vand.u32 %v422, 3
        %vm425 = vcmp.ge.s32.totalorder %v423, 1
        %vm426 = vcmp.ge.s32.totalorder %v424, 1
        %v427 = vsel %vm425, 1, 0
        %v428 = vsel %vm426, 1, 0
        %vm429 = vcmp.ge.s32.totalorder %v423, 2
        %vm430 = vcmp.ge.s32.totalorder %v424, 2
        %v431 = vsel %vm429, 1, 0
        %v432 = vsel %vm430, 1, 0
        %v433 = vshll.u32 %v431, 9
        %v434 = vshll.u32 %v432, 9
        %v435 = vadd.s32 %v427, %v433
        %v436 = vadd.s32 %v428, %v434
        %vm437 = vcmp.ge.s32.totalorder %v423, 3
        %vm438 = vcmp.ge.s32.totalorder %v424, 3
        %v439 = vsel %vm437, 1, 0
        %v440 = vsel %vm438, 1, 0
        %v441 = vshll.u32 %v439, 18
        %v442 = vshll.u32 %v440, 18
        %v443 = vadd.s32 %v435, %v441
        %v444 = vadd.s32 %v436, %v442
        %v445 = vsel %vm419, %v443, 0
        %v446 = vsel %vm420, %v444, 0
        %v447 = vadd.s32 %v445, %v446
        %v448 = vand.u32 %v447, 65535
        %v449 = vshrl.u32 %v447, 16
        %v450 = vcvt.s32.f32 %v448
        %v451 = vcvt.s32.f32 %v449
        %452 = vadd.xlane.f32.xlu0 %v450
        %v453 = vpop.xlane.xlu0 %452
        %454 = vadd.xlane.f32.xlu0 %v451
        %v455 = vpop.xlane.xlu0 %454
        %v456 = vcvt.f32.s32 %v453
        %v457 = vcvt.f32.s32 %v455
        %v458 = vshll.u32 %v457, 16
        %v459 = vadd.s32 %v458, %v456
        %v460 = vand.u32 %v459, 511
        %v461 = vshra.s32 %v459, 9
        %v462 = vand.u32 %v461, 511
        %v463 = vshra.s32 %v459, 18
        %v464 = vand.u32 %v463, 511
        %vm465 = vcmp.ge.s32.totalorder %v460, %v414
        %vm466 = vcmp.ge.s32.totalorder %v462, %v414
        %vm467 = vcmp.ge.s32.totalorder %v464, %v414
        %v468 = vsel %vm465, 1, 0
        %v469 = vsel %vm466, 1, 0
        %v470 = vadd.s32 %v468, %v469
        %v471 = vsel %vm467, 1, 0
        %v472 = vadd.s32 %v470, %v471
        %v473 = vsel %vm465, %v462, %v460
        %v474 = vsel %vm466, %v464, %v473
        %v475 = vsel %vm467, 0, %v474
        %v476 = vsub.s32 %v414, %v475
        %v477 = vshll.u32 %v472, 24
        %v478 = vor.u32 %v416, %v477
        %v479 = vand.u32 %v236, 4278190080
        %v480 = vand.u32 %v237, 4278190080
        %vm481 = vcmp.eq.s32.totalorder %v479, %v478
        %vm482 = vcmp.eq.s32.totalorder %v480, %v478
        %v483 = vshra.s32 %v236, 22
        %v484 = vshra.s32 %v237, 22
        %v485 = vand.u32 %v483, 3
        %v486 = vand.u32 %v484, 3
        %vm487 = vcmp.ge.s32.totalorder %v485, 1
        %vm488 = vcmp.ge.s32.totalorder %v486, 1
        %v489 = vsel %vm487, 1, 0
        %v490 = vsel %vm488, 1, 0
        %vm491 = vcmp.ge.s32.totalorder %v485, 2
        %vm492 = vcmp.ge.s32.totalorder %v486, 2
        %v493 = vsel %vm491, 1, 0
        %v494 = vsel %vm492, 1, 0
        %v495 = vshll.u32 %v493, 9
        %v496 = vshll.u32 %v494, 9
        %v497 = vadd.s32 %v489, %v495
        %v498 = vadd.s32 %v490, %v496
        %vm499 = vcmp.ge.s32.totalorder %v485, 3
        %vm500 = vcmp.ge.s32.totalorder %v486, 3
        %v501 = vsel %vm499, 1, 0
        %v502 = vsel %vm500, 1, 0
        %v503 = vshll.u32 %v501, 18
        %v504 = vshll.u32 %v502, 18
        %v505 = vadd.s32 %v497, %v503
        %v506 = vadd.s32 %v498, %v504
        %v507 = vsel %vm481, %v505, 0
        %v508 = vsel %vm482, %v506, 0
        %v509 = vadd.s32 %v507, %v508
        %v510 = vand.u32 %v509, 65535
        %v511 = vshrl.u32 %v509, 16
        %v512 = vcvt.s32.f32 %v510
        %v513 = vcvt.s32.f32 %v511
        %514 = vadd.xlane.f32.xlu0 %v512
        %v515 = vpop.xlane.xlu0 %514
        %516 = vadd.xlane.f32.xlu0 %v513
        %v517 = vpop.xlane.xlu0 %516
        %v518 = vcvt.f32.s32 %v515
        %v519 = vcvt.f32.s32 %v517
        %v520 = vshll.u32 %v519, 16
        %v521 = vadd.s32 %v520, %v518
        %v522 = vand.u32 %v521, 511
        %v523 = vshra.s32 %v521, 9
        %v524 = vand.u32 %v523, 511
        %v525 = vshra.s32 %v521, 18
        %v526 = vand.u32 %v525, 511
        %vm527 = vcmp.ge.s32.totalorder %v522, %v476
        %vm528 = vcmp.ge.s32.totalorder %v524, %v476
        %vm529 = vcmp.ge.s32.totalorder %v526, %v476
        %v530 = vsel %vm527, 1, 0
        %v531 = vsel %vm528, 1, 0
        %v532 = vadd.s32 %v530, %v531
        %v533 = vsel %vm529, 1, 0
        %v534 = vadd.s32 %v532, %v533
        %v535 = vsel %vm527, %v524, %v522
        %v536 = vsel %vm528, %v526, %v535
        %v537 = vsel %vm529, 0, %v536
        %v538 = vsub.s32 %v476, %v537
        %v539 = vshll.u32 %v534, 22
        %v540 = vor.u32 %v478, %v539
        %v541 = vand.u32 %v236, 4290772992
        %v542 = vand.u32 %v237, 4290772992
        %vm543 = vcmp.eq.s32.totalorder %v541, %v540
        %vm544 = vcmp.eq.s32.totalorder %v542, %v540
        %v545 = vshra.s32 %v236, 20
        %v546 = vshra.s32 %v237, 20
        %v547 = vand.u32 %v545, 3
        %v548 = vand.u32 %v546, 3
        %vm549 = vcmp.ge.s32.totalorder %v547, 1
        %vm550 = vcmp.ge.s32.totalorder %v548, 1
        %v551 = vsel %vm549, 1, 0
        %v552 = vsel %vm550, 1, 0
        %vm553 = vcmp.ge.s32.totalorder %v547, 2
        %vm554 = vcmp.ge.s32.totalorder %v548, 2
        %v555 = vsel %vm553, 1, 0
        %v556 = vsel %vm554, 1, 0
        %v557 = vshll.u32 %v555, 9
        %v558 = vshll.u32 %v556, 9
        %v559 = vadd.s32 %v551, %v557
        %v560 = vadd.s32 %v552, %v558
        %vm561 = vcmp.ge.s32.totalorder %v547, 3
        %vm562 = vcmp.ge.s32.totalorder %v548, 3
        %v563 = vsel %vm561, 1, 0
        %v564 = vsel %vm562, 1, 0
        %v565 = vshll.u32 %v563, 18
        %v566 = vshll.u32 %v564, 18
        %v567 = vadd.s32 %v559, %v565
        %v568 = vadd.s32 %v560, %v566
        %v569 = vsel %vm543, %v567, 0
        %v570 = vsel %vm544, %v568, 0
        %v571 = vadd.s32 %v569, %v570
        %v572 = vand.u32 %v571, 65535
        %v573 = vshrl.u32 %v571, 16
        %v574 = vcvt.s32.f32 %v572
        %v575 = vcvt.s32.f32 %v573
        %576 = vadd.xlane.f32.xlu0 %v574
        %v577 = vpop.xlane.xlu0 %576
        %578 = vadd.xlane.f32.xlu0 %v575
        %v579 = vpop.xlane.xlu0 %578
        %v580 = vcvt.f32.s32 %v577
        %v581 = vcvt.f32.s32 %v579
        %v582 = vshll.u32 %v581, 16
        %v583 = vadd.s32 %v582, %v580
        %v584 = vand.u32 %v583, 511
        %v585 = vshra.s32 %v583, 9
        %v586 = vand.u32 %v585, 511
        %v587 = vshra.s32 %v583, 18
        %v588 = vand.u32 %v587, 511
        %vm589 = vcmp.ge.s32.totalorder %v584, %v538
        %vm590 = vcmp.ge.s32.totalorder %v586, %v538
        %vm591 = vcmp.ge.s32.totalorder %v588, %v538
        %v592 = vsel %vm589, 1, 0
        %v593 = vsel %vm590, 1, 0
        %v594 = vadd.s32 %v592, %v593
        %v595 = vsel %vm591, 1, 0
        %v596 = vadd.s32 %v594, %v595
        %v597 = vsel %vm589, %v586, %v584
        %v598 = vsel %vm590, %v588, %v597
        %v599 = vsel %vm591, 0, %v598
        %v600 = vsub.s32 %v538, %v599
        %v601 = vshll.u32 %v596, 20
        %v602 = vor.u32 %v540, %v601
        %v603 = vand.u32 %v236, 4293918720
        %v604 = vand.u32 %v237, 4293918720
        %vm605 = vcmp.eq.s32.totalorder %v603, %v602
        %vm606 = vcmp.eq.s32.totalorder %v604, %v602
        %v607 = vshra.s32 %v236, 18
        %v608 = vshra.s32 %v237, 18
        %v609 = vand.u32 %v607, 3
        %v610 = vand.u32 %v608, 3
        %vm611 = vcmp.ge.s32.totalorder %v609, 1
        %vm612 = vcmp.ge.s32.totalorder %v610, 1
        %v613 = vsel %vm611, 1, 0
        %v614 = vsel %vm612, 1, 0
        %vm615 = vcmp.ge.s32.totalorder %v609, 2
        %vm616 = vcmp.ge.s32.totalorder %v610, 2
        %v617 = vsel %vm615, 1, 0
        %v618 = vsel %vm616, 1, 0
        %v619 = vshll.u32 %v617, 9
        %v620 = vshll.u32 %v618, 9
        %v621 = vadd.s32 %v613, %v619
        %v622 = vadd.s32 %v614, %v620
        %vm623 = vcmp.ge.s32.totalorder %v609, 3
        %vm624 = vcmp.ge.s32.totalorder %v610, 3
        %v625 = vsel %vm623, 1, 0
        %v626 = vsel %vm624, 1, 0
        %v627 = vshll.u32 %v625, 18
        %v628 = vshll.u32 %v626, 18
        %v629 = vadd.s32 %v621, %v627
        %v630 = vadd.s32 %v622, %v628
        %v631 = vsel %vm605, %v629, 0
        %v632 = vsel %vm606, %v630, 0
        %v633 = vadd.s32 %v631, %v632
        %v634 = vand.u32 %v633, 65535
        %v635 = vshrl.u32 %v633, 16
        %v636 = vcvt.s32.f32 %v634
        %v637 = vcvt.s32.f32 %v635
        %638 = vadd.xlane.f32.xlu0 %v636
        %v639 = vpop.xlane.xlu0 %638
        %640 = vadd.xlane.f32.xlu0 %v637
        %v641 = vpop.xlane.xlu0 %640
        %v642 = vcvt.f32.s32 %v639
        %v643 = vcvt.f32.s32 %v641
        %v644 = vshll.u32 %v643, 16
        %v645 = vadd.s32 %v644, %v642
        %v646 = vand.u32 %v645, 511
        %v647 = vshra.s32 %v645, 9
        %v648 = vand.u32 %v647, 511
        %v649 = vshra.s32 %v645, 18
        %v650 = vand.u32 %v649, 511
        %vm651 = vcmp.ge.s32.totalorder %v646, %v600
        %vm652 = vcmp.ge.s32.totalorder %v648, %v600
        %vm653 = vcmp.ge.s32.totalorder %v650, %v600
        %v654 = vsel %vm651, 1, 0
        %v655 = vsel %vm652, 1, 0
        %v656 = vadd.s32 %v654, %v655
        %v657 = vsel %vm653, 1, 0
        %v658 = vadd.s32 %v656, %v657
        %v659 = vsel %vm651, %v648, %v646
        %v660 = vsel %vm652, %v650, %v659
        %v661 = vsel %vm653, 0, %v660
        %v662 = vsub.s32 %v600, %v661
        %v663 = vshll.u32 %v658, 18
        %v664 = vor.u32 %v602, %v663
        %v665 = vand.u32 %v236, 4294705152
        %v666 = vand.u32 %v237, 4294705152
        %vm667 = vcmp.eq.s32.totalorder %v665, %v664
        %vm668 = vcmp.eq.s32.totalorder %v666, %v664
        %v669 = vshra.s32 %v236, 16
        %v670 = vshra.s32 %v237, 16
        %v671 = vand.u32 %v669, 3
        %v672 = vand.u32 %v670, 3
        %vm673 = vcmp.ge.s32.totalorder %v671, 1
        %vm674 = vcmp.ge.s32.totalorder %v672, 1
        %v675 = vsel %vm673, 1, 0
        %v676 = vsel %vm674, 1, 0
        %vm677 = vcmp.ge.s32.totalorder %v671, 2
        %vm678 = vcmp.ge.s32.totalorder %v672, 2
        %v679 = vsel %vm677, 1, 0
        %v680 = vsel %vm678, 1, 0
        %v681 = vshll.u32 %v679, 9
        %v682 = vshll.u32 %v680, 9
        %v683 = vadd.s32 %v675, %v681
        %v684 = vadd.s32 %v676, %v682
        %vm685 = vcmp.ge.s32.totalorder %v671, 3
        %vm686 = vcmp.ge.s32.totalorder %v672, 3
        %v687 = vsel %vm685, 1, 0
        %v688 = vsel %vm686, 1, 0
        %v689 = vshll.u32 %v687, 18
        %v690 = vshll.u32 %v688, 18
        %v691 = vadd.s32 %v683, %v689
        %v692 = vadd.s32 %v684, %v690
        %v693 = vsel %vm667, %v691, 0
        %v694 = vsel %vm668, %v692, 0
        %v695 = vadd.s32 %v693, %v694
        %v696 = vand.u32 %v695, 65535
        %v697 = vshrl.u32 %v695, 16
        %v698 = vcvt.s32.f32 %v696
        %v699 = vcvt.s32.f32 %v697
        %700 = vadd.xlane.f32.xlu0 %v698
        %v701 = vpop.xlane.xlu0 %700
        %702 = vadd.xlane.f32.xlu0 %v699
        %v703 = vpop.xlane.xlu0 %702
        %v704 = vcvt.f32.s32 %v701
        %v705 = vcvt.f32.s32 %v703
        %v706 = vshll.u32 %v705, 16
        %v707 = vadd.s32 %v706, %v704
        %v708 = vand.u32 %v707, 511
        %v709 = vshra.s32 %v707, 9
        %v710 = vand.u32 %v709, 511
        %v711 = vshra.s32 %v707, 18
        %v712 = vand.u32 %v711, 511
        %vm713 = vcmp.ge.s32.totalorder %v708, %v662
        %vm714 = vcmp.ge.s32.totalorder %v710, %v662
        %vm715 = vcmp.ge.s32.totalorder %v712, %v662
        %v716 = vsel %vm713, 1, 0
        %v717 = vsel %vm714, 1, 0
        %v718 = vadd.s32 %v716, %v717
        %v719 = vsel %vm715, 1, 0
        %v720 = vadd.s32 %v718, %v719
        %v721 = vsel %vm713, %v710, %v708
        %v722 = vsel %vm714, %v712, %v721
        %v723 = vsel %vm715, 0, %v722
        %v724 = vsub.s32 %v662, %v723
        %v725 = vshll.u32 %v720, 16
        %v726 = vor.u32 %v664, %v725
        %v727 = vand.u32 %v236, 4294901760
        %v728 = vand.u32 %v237, 4294901760
        %vm729 = vcmp.eq.s32.totalorder %v727, %v726
        %vm730 = vcmp.eq.s32.totalorder %v728, %v726
        %v731 = vshra.s32 %v236, 14
        %v732 = vshra.s32 %v237, 14
        %v733 = vand.u32 %v731, 3
        %v734 = vand.u32 %v732, 3
        %vm735 = vcmp.ge.s32.totalorder %v733, 1
        %vm736 = vcmp.ge.s32.totalorder %v734, 1
        %v737 = vsel %vm735, 1, 0
        %v738 = vsel %vm736, 1, 0
        %vm739 = vcmp.ge.s32.totalorder %v733, 2
        %vm740 = vcmp.ge.s32.totalorder %v734, 2
        %v741 = vsel %vm739, 1, 0
        %v742 = vsel %vm740, 1, 0
        %v743 = vshll.u32 %v741, 9
        %v744 = vshll.u32 %v742, 9
        %v745 = vadd.s32 %v737, %v743
        %v746 = vadd.s32 %v738, %v744
        %vm747 = vcmp.ge.s32.totalorder %v733, 3
        %vm748 = vcmp.ge.s32.totalorder %v734, 3
        %v749 = vsel %vm747, 1, 0
        %v750 = vsel %vm748, 1, 0
        %v751 = vshll.u32 %v749, 18
        %v752 = vshll.u32 %v750, 18
        %v753 = vadd.s32 %v745, %v751
        %v754 = vadd.s32 %v746, %v752
        %v755 = vsel %vm729, %v753, 0
        %v756 = vsel %vm730, %v754, 0
        %v757 = vadd.s32 %v755, %v756
        %v758 = vand.u32 %v757, 65535
        %v759 = vshrl.u32 %v757, 16
        %v760 = vcvt.s32.f32 %v758
        %v761 = vcvt.s32.f32 %v759
        %762 = vadd.xlane.f32.xlu0 %v760
        %v763 = vpop.xlane.xlu0 %762
        %764 = vadd.xlane.f32.xlu0 %v761
        %v765 = vpop.xlane.xlu0 %764
        %v766 = vcvt.f32.s32 %v763
        %v767 = vcvt.f32.s32 %v765
        %v768 = vshll.u32 %v767, 16
        %v769 = vadd.s32 %v768, %v766
        %v770 = vand.u32 %v769, 511
        %v771 = vshra.s32 %v769, 9
        %v772 = vand.u32 %v771, 511
        %v773 = vshra.s32 %v769, 18
        %v774 = vand.u32 %v773, 511
        %vm775 = vcmp.ge.s32.totalorder %v770, %v724
        %vm776 = vcmp.ge.s32.totalorder %v772, %v724
        %vm777 = vcmp.ge.s32.totalorder %v774, %v724
        %v778 = vsel %vm775, 1, 0
        %v779 = vsel %vm776, 1, 0
        %v780 = vadd.s32 %v778, %v779
        %v781 = vsel %vm777, 1, 0
        %v782 = vadd.s32 %v780, %v781
        %v783 = vsel %vm775, %v772, %v770
        %v784 = vsel %vm776, %v774, %v783
        %v785 = vsel %vm777, 0, %v784
        %v786 = vsub.s32 %v724, %v785
        %v787 = vshll.u32 %v782, 14
        %v788 = vor.u32 %v726, %v787
        %v789 = vand.u32 %v236, 4294950912
        %v790 = vand.u32 %v237, 4294950912
        %vm791 = vcmp.eq.s32.totalorder %v789, %v788
        %vm792 = vcmp.eq.s32.totalorder %v790, %v788
        %v793 = vshra.s32 %v236, 12
        %v794 = vshra.s32 %v237, 12
        %v795 = vand.u32 %v793, 3
        %v796 = vand.u32 %v794, 3
        %vm797 = vcmp.ge.s32.totalorder %v795, 1
        %vm798 = vcmp.ge.s32.totalorder %v796, 1
        %v799 = vsel %vm797, 1, 0
        %v800 = vsel %vm798, 1, 0
        %vm801 = vcmp.ge.s32.totalorder %v795, 2
        %vm802 = vcmp.ge.s32.totalorder %v796, 2
        %v803 = vsel %vm801, 1, 0
        %v804 = vsel %vm802, 1, 0
        %v805 = vshll.u32 %v803, 9
        %v806 = vshll.u32 %v804, 9
        %v807 = vadd.s32 %v799, %v805
        %v808 = vadd.s32 %v800, %v806
        %vm809 = vcmp.ge.s32.totalorder %v795, 3
        %vm810 = vcmp.ge.s32.totalorder %v796, 3
        %v811 = vsel %vm809, 1, 0
        %v812 = vsel %vm810, 1, 0
        %v813 = vshll.u32 %v811, 18
        %v814 = vshll.u32 %v812, 18
        %v815 = vadd.s32 %v807, %v813
        %v816 = vadd.s32 %v808, %v814
        %v817 = vsel %vm791, %v815, 0
        %v818 = vsel %vm792, %v816, 0
        %v819 = vadd.s32 %v817, %v818
        %v820 = vand.u32 %v819, 65535
        %v821 = vshrl.u32 %v819, 16
        %v822 = vcvt.s32.f32 %v820
        %v823 = vcvt.s32.f32 %v821
        %824 = vadd.xlane.f32.xlu0 %v822
        %v825 = vpop.xlane.xlu0 %824
        %826 = vadd.xlane.f32.xlu0 %v823
        %v827 = vpop.xlane.xlu0 %826
        %v828 = vcvt.f32.s32 %v825
        %v829 = vcvt.f32.s32 %v827
        %v830 = vshll.u32 %v829, 16
        %v831 = vadd.s32 %v830, %v828
        %v832 = vand.u32 %v831, 511
        %v833 = vshra.s32 %v831, 9
        %v834 = vand.u32 %v833, 511
        %v835 = vshra.s32 %v831, 18
        %v836 = vand.u32 %v835, 511
        %vm837 = vcmp.ge.s32.totalorder %v832, %v786
        %vm838 = vcmp.ge.s32.totalorder %v834, %v786
        %vm839 = vcmp.ge.s32.totalorder %v836, %v786
        %v840 = vsel %vm837, 1, 0
        %v841 = vsel %vm838, 1, 0
        %v842 = vadd.s32 %v840, %v841
        %v843 = vsel %vm839, 1, 0
        %v844 = vadd.s32 %v842, %v843
        %v845 = vsel %vm837, %v834, %v832
        %v846 = vsel %vm838, %v836, %v845
        %v847 = vsel %vm839, 0, %v846
        %v848 = vsub.s32 %v786, %v847
        %v849 = vshll.u32 %v844, 12
        %v850 = vor.u32 %v788, %v849
        %v851 = vand.u32 %v236, 4294963200
        %v852 = vand.u32 %v237, 4294963200
        %vm853 = vcmp.eq.s32.totalorder %v851, %v850
        %vm854 = vcmp.eq.s32.totalorder %v852, %v850
        %v855 = vshra.s32 %v236, 10
        %v856 = vshra.s32 %v237, 10
        %v857 = vand.u32 %v855, 3
        %v858 = vand.u32 %v856, 3
        %vm859 = vcmp.ge.s32.totalorder %v857, 1
        %vm860 = vcmp.ge.s32.totalorder %v858, 1
        %v861 = vsel %vm859, 1, 0
        %v862 = vsel %vm860, 1, 0
        %vm863 = vcmp.ge.s32.totalorder %v857, 2
        %vm864 = vcmp.ge.s32.totalorder %v858, 2
        %v865 = vsel %vm863, 1, 0
        %v866 = vsel %vm864, 1, 0
        %v867 = vshll.u32 %v865, 9
        %v868 = vshll.u32 %v866, 9
        %v869 = vadd.s32 %v861, %v867
        %v870 = vadd.s32 %v862, %v868
        %vm871 = vcmp.ge.s32.totalorder %v857, 3
        %vm872 = vcmp.ge.s32.totalorder %v858, 3
        %v873 = vsel %vm871, 1, 0
        %v874 = vsel %vm872, 1, 0
        %v875 = vshll.u32 %v873, 18
        %v876 = vshll.u32 %v874, 18
        %v877 = vadd.s32 %v869, %v875
        %v878 = vadd.s32 %v870, %v876
        %v879 = vsel %vm853, %v877, 0
        %v880 = vsel %vm854, %v878, 0
        %v881 = vadd.s32 %v879, %v880
        %v882 = vand.u32 %v881, 65535
        %v883 = vshrl.u32 %v881, 16
        %v884 = vcvt.s32.f32 %v882
        %v885 = vcvt.s32.f32 %v883
        %886 = vadd.xlane.f32.xlu0 %v884
        %v887 = vpop.xlane.xlu0 %886
        %888 = vadd.xlane.f32.xlu0 %v885
        %v889 = vpop.xlane.xlu0 %888
        %v890 = vcvt.f32.s32 %v887
        %v891 = vcvt.f32.s32 %v889
        %v892 = vshll.u32 %v891, 16
        %v893 = vadd.s32 %v892, %v890
        %v894 = vand.u32 %v893, 511
        %v895 = vshra.s32 %v893, 9
        %v896 = vand.u32 %v895, 511
        %v897 = vshra.s32 %v893, 18
        %v898 = vand.u32 %v897, 511
        %vm899 = vcmp.ge.s32.totalorder %v894, %v848
        %vm900 = vcmp.ge.s32.totalorder %v896, %v848
        %vm901 = vcmp.ge.s32.totalorder %v898, %v848
        %v902 = vsel %vm899, 1, 0
        %v903 = vsel %vm900, 1, 0
        %v904 = vadd.s32 %v902, %v903
        %v905 = vsel %vm901, 1, 0
        %v906 = vadd.s32 %v904, %v905
        %v907 = vsel %vm899, %v896, %v894
        %v908 = vsel %vm900, %v898, %v907
        %v909 = vsel %vm901, 0, %v908
        %v910 = vsub.s32 %v848, %v909
        %v911 = vshll.u32 %v906, 10
        %v912 = vor.u32 %v850, %v911
        %v913 = vand.u32 %v236, 4294966272
        %v914 = vand.u32 %v237, 4294966272
        %vm915 = vcmp.eq.s32.totalorder %v913, %v912
        %vm916 = vcmp.eq.s32.totalorder %v914, %v912
        %v917 = vshra.s32 %v236, 8
        %v918 = vshra.s32 %v237, 8
        %v919 = vand.u32 %v917, 3
        %v920 = vand.u32 %v918, 3
        %vm921 = vcmp.ge.s32.totalorder %v919, 1
        %vm922 = vcmp.ge.s32.totalorder %v920, 1
        %v923 = vsel %vm921, 1, 0
        %v924 = vsel %vm922, 1, 0
        %vm925 = vcmp.ge.s32.totalorder %v919, 2
        %vm926 = vcmp.ge.s32.totalorder %v920, 2
        %v927 = vsel %vm925, 1, 0
        %v928 = vsel %vm926, 1, 0
        %v929 = vshll.u32 %v927, 9
        %v930 = vshll.u32 %v928, 9
        %v931 = vadd.s32 %v923, %v929
        %v932 = vadd.s32 %v924, %v930
        %vm933 = vcmp.ge.s32.totalorder %v919, 3
        %vm934 = vcmp.ge.s32.totalorder %v920, 3
        %v935 = vsel %vm933, 1, 0
        %v936 = vsel %vm934, 1, 0
        %v937 = vshll.u32 %v935, 18
        %v938 = vshll.u32 %v936, 18
        %v939 = vadd.s32 %v931, %v937
        %v940 = vadd.s32 %v932, %v938
        %v941 = vsel %vm915, %v939, 0
        %v942 = vsel %vm916, %v940, 0
        %v943 = vadd.s32 %v941, %v942
        %v944 = vand.u32 %v943, 65535
        %v945 = vshrl.u32 %v943, 16
        %v946 = vcvt.s32.f32 %v944
        %v947 = vcvt.s32.f32 %v945
        %948 = vadd.xlane.f32.xlu0 %v946
        %v949 = vpop.xlane.xlu0 %948
        %950 = vadd.xlane.f32.xlu0 %v947
        %v951 = vpop.xlane.xlu0 %950
        %v952 = vcvt.f32.s32 %v949
        %v953 = vcvt.f32.s32 %v951
        %v954 = vshll.u32 %v953, 16
        %v955 = vadd.s32 %v954, %v952
        %v956 = vand.u32 %v955, 511
        %v957 = vshra.s32 %v955, 9
        %v958 = vand.u32 %v957, 511
        %v959 = vshra.s32 %v955, 18
        %v960 = vand.u32 %v959, 511
        %vm961 = vcmp.ge.s32.totalorder %v956, %v910
        %vm962 = vcmp.ge.s32.totalorder %v958, %v910
        %vm963 = vcmp.ge.s32.totalorder %v960, %v910
        %v964 = vsel %vm961, 1, 0
        %v965 = vsel %vm962, 1, 0
        %v966 = vadd.s32 %v964, %v965
        %v967 = vsel %vm963, 1, 0
        %v968 = vadd.s32 %v966, %v967
        %v969 = vsel %vm961, %v958, %v956
        %v970 = vsel %vm962, %v960, %v969
        %v971 = vsel %vm963, 0, %v970
        %v972 = vsub.s32 %v910, %v971
        %v973 = vshll.u32 %v968, 8
        %v974 = vor.u32 %v912, %v973
        %v975 = vand.u32 %v236, 4294967040
        %v976 = vand.u32 %v237, 4294967040
        %vm977 = vcmp.eq.s32.totalorder %v975, %v974
        %vm978 = vcmp.eq.s32.totalorder %v976, %v974
        %v979 = vshra.s32 %v236, 6
        %v980 = vshra.s32 %v237, 6
        %v981 = vand.u32 %v979, 3
        %v982 = vand.u32 %v980, 3
        %vm983 = vcmp.ge.s32.totalorder %v981, 1
        %vm984 = vcmp.ge.s32.totalorder %v982, 1
        %v985 = vsel %vm983, 1, 0
        %v986 = vsel %vm984, 1, 0
        %vm987 = vcmp.ge.s32.totalorder %v981, 2
        %vm988 = vcmp.ge.s32.totalorder %v982, 2
        %v989 = vsel %vm987, 1, 0
        %v990 = vsel %vm988, 1, 0
        %v991 = vshll.u32 %v989, 9
        %v992 = vshll.u32 %v990, 9
        %v993 = vadd.s32 %v985, %v991
        %v994 = vadd.s32 %v986, %v992
        %vm995 = vcmp.ge.s32.totalorder %v981, 3
        %vm996 = vcmp.ge.s32.totalorder %v982, 3
        %v997 = vsel %vm995, 1, 0
        %v998 = vsel %vm996, 1, 0
        %v999 = vshll.u32 %v997, 18
        %v1000 = vshll.u32 %v998, 18
        %v1001 = vadd.s32 %v993, %v999
        %v1002 = vadd.s32 %v994, %v1000
        %v1003 = vsel %vm977, %v1001, 0
        %v1004 = vsel %vm978, %v1002, 0
        %v1005 = vadd.s32 %v1003, %v1004
        %v1006 = vand.u32 %v1005, 65535
        %v1007 = vshrl.u32 %v1005, 16
        %v1008 = vcvt.s32.f32 %v1006
        %v1009 = vcvt.s32.f32 %v1007
        %1010 = vadd.xlane.f32.xlu0 %v1008
        %v1011 = vpop.xlane.xlu0 %1010
        %1012 = vadd.xlane.f32.xlu0 %v1009
        %v1013 = vpop.xlane.xlu0 %1012
        %v1014 = vcvt.f32.s32 %v1011
        %v1015 = vcvt.f32.s32 %v1013
        %v1016 = vshll.u32 %v1015, 16
        %v1017 = vadd.s32 %v1016, %v1014
        %v1018 = vand.u32 %v1017, 511
        %v1019 = vshra.s32 %v1017, 9
        %v1020 = vand.u32 %v1019, 511
        %v1021 = vshra.s32 %v1017, 18
        %v1022 = vand.u32 %v1021, 511
        %vm1023 = vcmp.ge.s32.totalorder %v1018, %v972
        %vm1024 = vcmp.ge.s32.totalorder %v1020, %v972
        %vm1025 = vcmp.ge.s32.totalorder %v1022, %v972
        %v1026 = vsel %vm1023, 1, 0
        %v1027 = vsel %vm1024, 1, 0
        %v1028 = vadd.s32 %v1026, %v1027
        %v1029 = vsel %vm1025, 1, 0
        %v1030 = vadd.s32 %v1028, %v1029
        %v1031 = vsel %vm1023, %v1020, %v1018
        %v1032 = vsel %vm1024, %v1022, %v1031
        %v1033 = vsel %vm1025, 0, %v1032
        %v1034 = vsub.s32 %v972, %v1033
        %v1035 = vshll.u32 %v1030, 6
        %v1036 = vor.u32 %v974, %v1035
        %v1037 = vand.u32 %v236, 4294967232
        %v1038 = vand.u32 %v237, 4294967232
        %vm1039 = vcmp.eq.s32.totalorder %v1037, %v1036
        %vm1040 = vcmp.eq.s32.totalorder %v1038, %v1036
        %v1041 = vshra.s32 %v236, 4
        %v1042 = vshra.s32 %v237, 4
        %v1043 = vand.u32 %v1041, 3
        %v1044 = vand.u32 %v1042, 3
        %vm1045 = vcmp.ge.s32.totalorder %v1043, 1
        %vm1046 = vcmp.ge.s32.totalorder %v1044, 1
        %v1047 = vsel %vm1045, 1, 0
        %v1048 = vsel %vm1046, 1, 0
        %vm1049 = vcmp.ge.s32.totalorder %v1043, 2
        %vm1050 = vcmp.ge.s32.totalorder %v1044, 2
        %v1051 = vsel %vm1049, 1, 0
        %v1052 = vsel %vm1050, 1, 0
        %v1053 = vshll.u32 %v1051, 9
        %v1054 = vshll.u32 %v1052, 9
        %v1055 = vadd.s32 %v1047, %v1053
        %v1056 = vadd.s32 %v1048, %v1054
        %vm1057 = vcmp.ge.s32.totalorder %v1043, 3
        %vm1058 = vcmp.ge.s32.totalorder %v1044, 3
        %v1059 = vsel %vm1057, 1, 0
        %v1060 = vsel %vm1058, 1, 0
        %v1061 = vshll.u32 %v1059, 18
        %v1062 = vshll.u32 %v1060, 18
        %v1063 = vadd.s32 %v1055, %v1061
        %v1064 = vadd.s32 %v1056, %v1062
        %v1065 = vsel %vm1039, %v1063, 0
        %v1066 = vsel %vm1040, %v1064, 0
        %v1067 = vadd.s32 %v1065, %v1066
        %v1068 = vand.u32 %v1067, 65535
        %v1069 = vshrl.u32 %v1067, 16
        %v1070 = vcvt.s32.f32 %v1068
        %v1071 = vcvt.s32.f32 %v1069
        %1072 = vadd.xlane.f32.xlu0 %v1070
        %v1073 = vpop.xlane.xlu0 %1072
        %1074 = vadd.xlane.f32.xlu0 %v1071
        %v1075 = vpop.xlane.xlu0 %1074
        %v1076 = vcvt.f32.s32 %v1073
        %v1077 = vcvt.f32.s32 %v1075
        %v1078 = vshll.u32 %v1077, 16
        %v1079 = vadd.s32 %v1078, %v1076
        %v1080 = vand.u32 %v1079, 511
        %v1081 = vshra.s32 %v1079, 9
        %v1082 = vand.u32 %v1081, 511
        %v1083 = vshra.s32 %v1079, 18
        %v1084 = vand.u32 %v1083, 511
        %vm1085 = vcmp.ge.s32.totalorder %v1080, %v1034
        %vm1086 = vcmp.ge.s32.totalorder %v1082, %v1034
        %vm1087 = vcmp.ge.s32.totalorder %v1084, %v1034
        %v1088 = vsel %vm1085, 1, 0
        %v1089 = vsel %vm1086, 1, 0
        %v1090 = vadd.s32 %v1088, %v1089
        %v1091 = vsel %vm1087, 1, 0
        %v1092 = vadd.s32 %v1090, %v1091
        %v1093 = vsel %vm1085, %v1082, %v1080
        %v1094 = vsel %vm1086, %v1084, %v1093
        %v1095 = vsel %vm1087, 0, %v1094
        %v1096 = vsub.s32 %v1034, %v1095
        %v1097 = vshll.u32 %v1092, 4
        %v1098 = vor.u32 %v1036, %v1097
        %v1099 = vand.u32 %v236, 4294967280
        %v1100 = vand.u32 %v237, 4294967280
        %vm1101 = vcmp.eq.s32.totalorder %v1099, %v1098
        %vm1102 = vcmp.eq.s32.totalorder %v1100, %v1098
        %v1103 = vshra.s32 %v236, 2
        %v1104 = vshra.s32 %v237, 2
        %v1105 = vand.u32 %v1103, 3
        %v1106 = vand.u32 %v1104, 3
        %vm1107 = vcmp.ge.s32.totalorder %v1105, 1
        %vm1108 = vcmp.ge.s32.totalorder %v1106, 1
        %v1109 = vsel %vm1107, 1, 0
        %v1110 = vsel %vm1108, 1, 0
        %vm1111 = vcmp.ge.s32.totalorder %v1105, 2
        %vm1112 = vcmp.ge.s32.totalorder %v1106, 2
        %v1113 = vsel %vm1111, 1, 0
        %v1114 = vsel %vm1112, 1, 0
        %v1115 = vshll.u32 %v1113, 9
        %v1116 = vshll.u32 %v1114, 9
        %v1117 = vadd.s32 %v1109, %v1115
        %v1118 = vadd.s32 %v1110, %v1116
        %vm1119 = vcmp.ge.s32.totalorder %v1105, 3
        %vm1120 = vcmp.ge.s32.totalorder %v1106, 3
        %v1121 = vsel %vm1119, 1, 0
        %v1122 = vsel %vm1120, 1, 0
        %v1123 = vshll.u32 %v1121, 18
        %v1124 = vshll.u32 %v1122, 18
        %v1125 = vadd.s32 %v1117, %v1123
        %v1126 = vadd.s32 %v1118, %v1124
        %v1127 = vsel %vm1101, %v1125, 0
        %v1128 = vsel %vm1102, %v1126, 0
        %v1129 = vadd.s32 %v1127, %v1128
        %v1130 = vand.u32 %v1129, 65535
        %v1131 = vshrl.u32 %v1129, 16
        %v1132 = vcvt.s32.f32 %v1130
        %v1133 = vcvt.s32.f32 %v1131
        %1134 = vadd.xlane.f32.xlu0 %v1132
        %v1135 = vpop.xlane.xlu0 %1134
        %1136 = vadd.xlane.f32.xlu0 %v1133
        %v1137 = vpop.xlane.xlu0 %1136
        %v1138 = vcvt.f32.s32 %v1135
        %v1139 = vcvt.f32.s32 %v1137
        %v1140 = vshll.u32 %v1139, 16
        %v1141 = vadd.s32 %v1140, %v1138
        %v1142 = vand.u32 %v1141, 511
        %v1143 = vshra.s32 %v1141, 9
        %v1144 = vand.u32 %v1143, 511
        %v1145 = vshra.s32 %v1141, 18
        %v1146 = vand.u32 %v1145, 511
        %vm1147 = vcmp.ge.s32.totalorder %v1142, %v1096
        %vm1148 = vcmp.ge.s32.totalorder %v1144, %v1096
        %vm1149 = vcmp.ge.s32.totalorder %v1146, %v1096
        %v1150 = vsel %vm1147, 1, 0
        %v1151 = vsel %vm1148, 1, 0
        %v1152 = vadd.s32 %v1150, %v1151
        %v1153 = vsel %vm1149, 1, 0
        %v1154 = vadd.s32 %v1152, %v1153
        %v1155 = vsel %vm1147, %v1144, %v1142
        %v1156 = vsel %vm1148, %v1146, %v1155
        %v1157 = vsel %vm1149, 0, %v1156
        %v1158 = vsub.s32 %v1096, %v1157
        %v1159 = vshll.u32 %v1154, 2
        %v1160 = vor.u32 %v1098, %v1159
        %v1161 = vand.u32 %v236, 4294967292
        %v1162 = vand.u32 %v237, 4294967292
        %vm1163 = vcmp.eq.s32.totalorder %v1161, %v1160
        %vm1164 = vcmp.eq.s32.totalorder %v1162, %v1160
        %v1165 = vand.u32 %v236, 3
        %v1166 = vand.u32 %v237, 3
        %vm1167 = vcmp.ge.s32.totalorder %v1165, 1
        %vm1168 = vcmp.ge.s32.totalorder %v1166, 1
        %v1169 = vsel %vm1167, 1, 0
        %v1170 = vsel %vm1168, 1, 0
        %vm1171 = vcmp.ge.s32.totalorder %v1165, 2
        %vm1172 = vcmp.ge.s32.totalorder %v1166, 2
        %v1173 = vsel %vm1171, 1, 0
        %v1174 = vsel %vm1172, 1, 0
        %v1175 = vshll.u32 %v1173, 9
        %v1176 = vshll.u32 %v1174, 9
        %v1177 = vadd.s32 %v1169, %v1175
        %v1178 = vadd.s32 %v1170, %v1176
        %vm1179 = vcmp.ge.s32.totalorder %v1165, 3
        %vm1180 = vcmp.ge.s32.totalorder %v1166, 3
        %v1181 = vsel %vm1179, 1, 0
        %v1182 = vsel %vm1180, 1, 0
        %v1183 = vshll.u32 %v1181, 18
        %v1184 = vshll.u32 %v1182, 18
        %v1185 = vadd.s32 %v1177, %v1183
        %v1186 = vadd.s32 %v1178, %v1184
        %v1187 = vsel %vm1163, %v1185, 0
        %v1188 = vsel %vm1164, %v1186, 0
        %v1189 = vadd.s32 %v1187, %v1188
        %v1190 = vand.u32 %v1189, 65535
        %v1191 = vshrl.u32 %v1189, 16
        %v1192 = vcvt.s32.f32 %v1190
        %v1193 = vcvt.s32.f32 %v1191
        %1194 = vadd.xlane.f32.xlu0 %v1192
        %v1195 = vpop.xlane.xlu0 %1194
        %1196 = vadd.xlane.f32.xlu0 %v1193
        %v1197 = vpop.xlane.xlu0 %1196
        %v1198 = vcvt.f32.s32 %v1195
        %v1199 = vcvt.f32.s32 %v1197
        %v1200 = vshll.u32 %v1199, 16
        %v1201 = vadd.s32 %v1200, %v1198
        %v1202 = vand.u32 %v1201, 511
        %v1203 = vshra.s32 %v1201, 9
        %v1204 = vand.u32 %v1203, 511
        %v1205 = vshra.s32 %v1201, 18
        %v1206 = vand.u32 %v1205, 511
        %vm1207 = vcmp.ge.s32.totalorder %v1202, %v1158
        %vm1208 = vcmp.ge.s32.totalorder %v1204, %v1158
        %vm1209 = vcmp.ge.s32.totalorder %v1206, %v1158
        %v1210 = vsel %vm1207, 1, 0
        %v1211 = vsel %vm1208, 1, 0
        %v1212 = vadd.s32 %v1210, %v1211
        %v1213 = vsel %vm1209, 1, 0
        %v1214 = vadd.s32 %v1212, %v1213
        %v1215 = vor.u32 %v1160, %v1214
        %vm1216 = vcmp.lt.s32.totalorder %v1215, 0
        %v1217 = vsel %vm1216, 2147483648, 4294967295
        %v1218 = vxor.u32 %v1215, %v1217
        %v1220 = vld [vmem:[#allocation6] sm:$0xff]
        %v1221 = vld [vmem:[#allocation2] sm:$0x1]
        %v1222 = vmul.f32 %v1218, %v1220
        %v1223 = vadd.f32 %v1221, %v1222
        %v1226 = vunpack.c.l.s4 1966171168
        %v1227 = vunpack.c.0.s8 %v1226
        %v1228 = vlaneseq
        %v1229 = vshrl.u32 %v1228, 7
        %v1230 = vsub.s32 %v1227, %v1229
        %v1231 = vrot.slane %v1222, %v1230
        %v1232 = vcombine.high %v1231, %v1231
        %v1234 = vunpack.c.l.s4 1966171168
        %v1235 = vunpack.c.0.s8 %v1234
        %v1236 = vlaneseq
        %v1237 = vshrl.u32 %v1236, 7
        %v1238 = vsub.s32 %v1235, %v1237
        %v1239 = vrot.slane %v1231, %v1238
        %v1241 = vunpack.c.l.s4 1966171168
        %v1242 = vunpack.c.0.s8 %v1241
        %v1243 = vlaneseq
        %v1244 = vshrl.u32 %v1243, 7
        %v1245 = vsub.s32 %v1242, %v1244
        %v1246 = vrot.slane %v1232, %v1245
        %v1248 = vadd.f32 %v1223, %v1246
        %v1249 = vcombine.high %v1239, %v1239
        %v1251 = vadd.f32 %v1248, %v1249
        %v1252 = vcombine.high %v1246, %v1246
        %v1254 = vadd.f32 %v1251, %v1252
        %v1255 = vcombine.high %v1222, %v1222
        %v1257 = vunpack.c.l.s4 1966171168
        %v1258 = vunpack.c.0.s8 %v1257
        %v1259 = vlaneseq
        %v1260 = vshrl.u32 %v1259, 7
        %v1261 = vsub.s32 %v1258, %v1260
        %v1262 = vrot.slane %v1255, %v1261
        %v1264 = vunpack.c.l.s4 1966171168
        %v1265 = vunpack.c.0.s8 %v1264
        %v1266 = vlaneseq
        %v1267 = vshrl.u32 %v1266, 7
        %v1268 = vsub.s32 %v1265, %v1267
        %v1269 = vrot.slane %v1262, %v1268
        %v1271 = vadd.f32 %v1254, %v1269
        %v1272 = vcombine.high %v1262, %v1262
        %v1274 = vunpack.c.l.s4 1966171168
        %v1275 = vunpack.c.0.s8 %v1274
        %v1276 = vlaneseq
        %v1277 = vshrl.u32 %v1276, 7
        %v1278 = vsub.s32 %v1275, %v1277
        %v1279 = vrot.slane %v1272, %v1278
        %v1281 = vadd.f32 %v1271, %v1279
        %v1282 = vcombine.high %v1269, %v1269
        %v1284 = vadd.f32 %v1281, %v1282
        %v1285 = vcombine.high %v1279, %v1279
        %v1287 = vadd.f32 %v1284, %v1285
        %1288 = vst [vmem:[#allocation2] sm:$0x1] %v1287
        // Predicated region
        $region45: #{tpu_custom_call.1} parent=31 // pred_check
          %p1289 = pneg %p222
        $region46: #{tpu_custom_call.1} parent=31 // pred_check_branch
          %1291 = sbr.rel (%p1289) target = $region48
        $region47: #{tpu_custom_call.1} parent=31 // pred_region
          %v1292 = vld [vmem:[#allocation2] sm:$0x1]
          %1293 = vst [vmem:[%s221] sm:$0x1] %v1292
        $region48: #{tpu_custom_call.1} parent=31 // pred_fallthru
          _
        %s1294 = sand.u32 %s116, 1
        %s1295 = scalar_lea.sflag [#allocation5], %s1294
        %s1296 = sand.u32 %s116, 1
        %s1297 = scalar_lea.vmem [#allocation8], %s1296
        // Predicated region
        $region49: #{tpu_custom_call.1} parent=31 // pred_check
          %p1298 = pneg %p126
        $region50: #{tpu_custom_call.1} parent=31 // pred_check_branch
          %1300 = sbr.rel (%p1298) target = $region52
        $region51: #{tpu_custom_call.1} parent=31 // pred_region
          %s1302 = ssub.s32 16, 16
          %1303 = vsyncadd %s1295, %s1302
          %s1304 = smul.addr %s25, 16
          %s1305 = scalar_lea.hbm %s3, %s1304
          %s1307 = sshll.u32 %s1297, 4
          %s1308 = int_to_ptr.vmem [resolvable:$true] %s1307
          %1310 = dma.vmem_to_hbm [thread:$0]  %s1308, 16, %s1305, %s1295
        $region52: #{tpu_custom_call.1} parent=31 // pred_fallthru
          _
      $region32: #{tpu_custom_call.1} parent=5 // pred_fallthru
        _
      %p1311 = scmp.le.s32.totalorder 2, %s16
      // Predicated region
      $region53: #{tpu_custom_call.1} parent=5 // pred_check
        %p1312 = pneg %p1311
      $region54: #{tpu_custom_call.1} parent=5 // pred_check_branch
        %1314 = sbr.rel (%p1312) target = $region56
      $region55: #{tpu_custom_call.1} parent=5 // pred_region
        %s1315 = ssub.s32 %s16, 2
        // Predicated region
        $region57: #{tpu_custom_call.1} parent=55 // pred_check
          %p1316 = pneg %p132
        $region58: #{tpu_custom_call.1} parent=55 // pred_check_branch
          %1318 = sbr.rel (%p1316) target = $region60
        $region59: #{tpu_custom_call.1} parent=55 // pred_region
          %s1319 = sand.u32 %s117, 1
          %s1320 = scalar_lea.sflag [#allocation5], %s1319
          %s1321 = sand.u32 %s117, 1
          %s1322 = scalar_lea.vmem [#allocation8], %s1321
          %1323 = dma.done %s1320, 16
        $region60: #{tpu_custom_call.1} parent=55 // pred_fallthru
          _
      $region56: #{tpu_custom_call.1} parent=5 // pred_fallthru
        _
    $region6: #{tpu_custom_call.1} parent=1 // loop_footer
      %s20 = sadd.s32 1, %s16
    $region7: #{tpu_custom_call.1} parent=1 // loop_footer_branch
      %15 = sbr.rel target = $region3
    $region8: #{tpu_custom_call.1} parent=1 // loop_exit
      _
    %1324 = vsyncpa [#allocation4], 1
    %s1325 = scalar_lea.sflag [#allocation4], 1
    %1326 = vsyncpa %s1325, 1
    %1327 = vsyncpa [#allocation7], 1
    %1328 = vsyncpa [#allocation5], 1
    %s1329 = scalar_lea.sflag [#allocation5], 1
    %1330 = vsyncpa %s1329, 1

</llo_original>
